<compile_context>
chip_gen: v5e
topology: v5e:2x2
jax: 0.10.0
libtpu: 0.0.40
codegen_flags: <defaults>
</compile_context>

<pallas_src>
import math
import functools

import jax
import jax.numpy as jnp
from jax.experimental import pallas as pl
from jax.experimental.pallas import tpu as pltpu


_GELU_C = math.sqrt(2.0 / math.pi)

# Conservative VMEM working-set budget: v7x has only 64 MiB physical per TC,
# so keep the kernel under ~48 MiB (v5e/v6e's 128 MiB is then comfortable).
_VMEM_BUDGET = 48 * 1024 * 1024
# If both bf16 weight matrices fit under this, keep the full hidden dim
# resident (th = H): weights are DMA'd exactly once for the whole kernel
# instead of once per M tile.
_RESIDENT_WEIGHT_BYTES = 20 * 1024 * 1024


def _new_gelu(x):
    # 0.5 * x * (1 + tanh(sqrt(2/pi) * (x + 0.044715 * x^3)))
    # Cube as x*x*x: two VALU multiplies, keeps the EUP slot free for tanh.
    x3 = x * x * x
    return 0.5 * x * (1.0 + jnp.tanh(_GELU_C * (x + 0.044715 * x3)))


def mlp_kernel(x_ref, wfc_ref, bfc_ref, wproj_ref, bproj_ref, o_ref):
    # Grid: (M tiles [parallel], H tiles [arbitrary/reduction]).
    #   x_ref:     (tm, C) f32      wfc_ref:   (C, th) bf16   bfc_ref: (1, th) f32
    #   wproj_ref: (th, C) bf16     bproj_ref: (1, C)  f32    o_ref:   (tm, C) f32
    # The output block index is constant across j, so o_ref itself is the f32
    # accumulator (no scratch; frees VMEM and removes the final acc->o copy).
    j = pl.program_id(1)

    @pl.when(j == 0)
    def _():
        o_ref[...] = jnp.zeros_like(o_ref)

    # Cast x to bf16 in-kernel (cheap VPU pack; avoids a wrapper-side XLA cast).
    x_bf = x_ref[...].astype(jnp.bfloat16)
    # First GEMM on the MXU: bf16 x bf16 -> f32.
    h = jnp.dot(x_bf, wfc_ref[...], preferred_element_type=jnp.float32)
    # Bias + GELU in f32 on VPU/EUP. Elementwise per hidden column, so the
    # H-tiled fusion is exact: y = sum_h gelu(x@Wfc[:,h] + bfc[h]) @ Wproj[h,:].
    h = _new_gelu(h + bfc_ref[...])
    # Second GEMM: this hidden tile's partial contribution, f32 accumulate.
    o_ref[...] += jnp.dot(h.astype(jnp.bfloat16), wproj_ref[...],
                          preferred_element_type=jnp.float32)

    @pl.when(j == pl.num_programs(1) - 1)
    def _():
        o_ref[...] += bproj_ref[...]
    # TODO(synk): dropout omitted (treated as eval mode / p == 0.0).


def _round_up(x, m):
    return ((x + m - 1) // m) * m


def _vmem_need(tm, th, C):
    return (2 * tm * C * 4            # x blocks (f32, double-buffered)
            + 2 * 2 * C * th * 2      # W_fc + W_proj blocks (bf16, x2 buffers)
            + 2 * (th + C) * 4        # bias blocks
            + 2 * tm * C * 4          # output / accumulator blocks (f32)
            + tm * th * 4             # h intermediate (f32)
            + tm * C * 2)             # in-kernel bf16 copy of x


@functools.partial(jax.jit, static_argnames=("tm",))
def mlp_forward(x, w_fc, b_fc, w_proj, b_proj, *, tm=512):
    """x: (B, T, n_embd). Weights pre-transposed to (in, out) layout."""
    B, T, C = x.shape
    H = w_fc.shape[1]
    M = B * T

    # --- tile selection (all static Python ints) -------------------------
    # Row tile: as large as M allows (>= 128) for weight-byte reuse.
    tm = min(tm, max(128, _round_up(M, 128)))

    # Hidden tile: full H when the bf16 weights fit (DMA'd once total);
    # otherwise the largest multiple-of-128 divisor of H that is <= 1024.
    if 2 * C * H * 2 <= _RESIDENT_WEIGHT_BYTES:
        th = H
    else:
        th = next((d for d in range(1024, 127, -128) if H % d == 0), H)

    # Shrink tm until the working set fits the conservative VMEM budget.
    while _vmem_need(tm, th, C) > _VMEM_BUDGET and tm > 128:
        tm //= 2

    num_h = H // th
    m_pad = _round_up(M, tm)
    num_m = m_pad // tm

    # Pad rows so any B*T works with an MXU-friendly row tile (padded rows
    # compute garbage that is sliced off below).
    x2d = x.reshape(M, C).astype(jnp.float32)
    if m_pad != M:
        x2d = jnp.pad(x2d, ((0, m_pad - M), (0, 0)))

    # bf16 weights for the MXU; biases stay f32 for the VPU/EUP epilogue.
    wfc_bf = w_fc.astype(jnp.bfloat16)
    wproj_bf = w_proj.astype(jnp.bfloat16)
    bfc2 = b_fc.reshape(1, H).astype(jnp.float32)
    bproj2 = b_proj.reshape(1, C).astype(jnp.float32)

    # Advisory cost estimate: weights are re-streamed once per M tile when H
    # is tiled; exactly once when they are resident (num_h == 1).
    weight_reads = num_m if num_h > 1 else 1
    cost = pl.CostEstimate(
        flops=4 * m_pad * C * H,                      # two GEMMs
        transcendentals=m_pad * H,                    # tanh per hidden act
        bytes_accessed=(m_pad * C * 4                 # x (f32)
                        + weight_reads * 2 * C * H * 2  # weights (bf16, streamed)
                        + (H + C) * 4                 # biases
                        + m_pad * C * 4),             # output (f32)
    )

    vmem_need = _vmem_need(tm, th, C)
    vmem_limit = int(min(56 * 1024 * 1024,
                         max(32 * 1024 * 1024, int(1.25 * vmem_need))))

    out2d = pl.pallas_call(
        mlp_kernel,
        out_shape=jax.ShapeDtypeStruct((m_pad, C), jnp.float32),
        grid_spec=pltpu.PrefetchScalarGridSpec(
            num_scalar_prefetch=0,
            grid=(num_m, num_h),
            in_specs=[
                pl.BlockSpec((tm, C), lambda i, j: (i, 0)),   # x rows
                pl.BlockSpec((C, th), lambda i, j: (0, j)),   # W_fc hidden tile
                pl.BlockSpec((1, th), lambda i, j: (0, j)),   # b_fc hidden tile
                pl.BlockSpec((th, C), lambda i, j: (j, 0)),   # W_proj hidden tile
                pl.BlockSpec((1, C), lambda i, j: (0, 0)),    # b_proj
            ],
            out_specs=pl.BlockSpec((tm, C), lambda i, j: (i, 0)),
        ),
        compiler_params=pltpu.CompilerParams(
            dimension_semantics=("parallel", "arbitrary"),
            vmem_limit_bytes=vmem_limit,
        ),
        cost_estimate=cost,
    )(x2d, wfc_bf, bfc2, wproj_bf, bproj2)

    return out2d[:M].reshape(B, T, C).astype(x.dtype)


def reference_mlp(x, w_fc, b_fc, w_proj, b_proj):
    h = jnp.einsum("btc,ch->bth", x, w_fc) + b_fc
    h = _new_gelu(h)
    return jnp.einsum("bth,hc->btc", h, w_proj) + b_proj


if __name__ == "__main__":
    # Small but MXU/lane-friendly config: n_embd=128 (lane-dense output),
    # hidden = 4*128 = 512, B*T = 256 rows.
    B, T, C = 2, 128, 128
    H = 4 * C

    key = jax.random.PRNGKey(0)
    kx, k1, k2, k3, k4 = jax.random.split(key, 5)

    x = jax.random.normal(kx, (B, T, C), dtype=jnp.float32)
    # Weights stored as (in, out), i.e. W^T of the PyTorch Linear.
    w_fc = jax.random.normal(k1, (C, H), dtype=jnp.float32) * 0.02
    b_fc = jax.random.normal(k2, (H,), dtype=jnp.float32) * 0.02
    w_proj = jax.random.normal(k3, (H, C), dtype=jnp.float32) * 0.02
    b_proj = jax.random.normal(k4, (C,), dtype=jnp.float32) * 0.02

    y = mlp_forward(x, w_fc, b_fc, w_proj, b_proj)
    y = jax.block_until_ready(y)

    y_ref = reference_mlp(x, w_fc, b_fc, w_proj, b_proj)
    assert y.shape == (B, T, C)
    # bf16 MXU operands with f32 accumulation -> loosened tolerance vs f32 ref.
    assert jnp.allclose(y, y_ref, atol=2e-2, rtol=2e-2), float(
        jnp.max(jnp.abs(y - y_ref)))

    print("KERNEL_OK")
</pallas_src>

<mosaic_0001>
module attributes {stable_mosaic.version = 11 : i64} {
  func.func @mlp_kernel(%arg0: i32, %arg1: i32, %arg2: memref<256x128xf32, #tpu.memory_space<vmem>>, %arg3: memref<128x512xbf16, #tpu.memory_space<vmem>>, %arg4: memref<1x512xf32, #tpu.memory_space<vmem>>, %arg5: memref<512x128xbf16, #tpu.memory_space<vmem>>, %arg6: memref<1x128xf32, #tpu.memory_space<vmem>>, %arg7: memref<256x128xf32, #tpu.memory_space<vmem>>) attributes {dimension_semantics = [#tpu.dimension_semantics<parallel>, #tpu.dimension_semantics<arbitrary>], iteration_bounds = array<i64: 1, 1>, scalar_prefetch = 0 : i64, scratch_operands = 0 : i64, tpu.core_type = #tpu.core_type<tc>, window_params = [{transform_indices = @transform_0, window_bounds = array<i64: 256, 128>}, {transform_indices = @transform_1, window_bounds = array<i64: 128, 512>}, {transform_indices = @transform_2, window_bounds = array<i64: 1, 512>}, {transform_indices = @transform_3, window_bounds = array<i64: 512, 128>}, {pipeline_mode = #tpu.pipeline_mode<synchronous>, transform_indices = @transform_4, window_bounds = array<i64: 1, 128>}, {transform_indices = @transform_5, window_bounds = array<i64: 256, 128>}]} {
    %c0_i32 = arith.constant 0 : i32
    %0 = arith.cmpi eq, %arg1, %c0_i32 : i32
    %1 = arith.extui %0 : i1 to i32
    %c0_i32_0 = arith.constant 0 : i32
    %2 = arith.cmpi ne, %1, %c0_i32_0 : i32
    scf.if %2 {
      %cst_19 = arith.constant 0.000000e+00 : f32
      %32 = vector.broadcast %cst_19 : f32 to vector<256x128xf32>
      %c0_20 = arith.constant 0 : index
      %c0_21 = arith.constant 0 : index
      %33 = vector.load %arg7[%c0_20, %c0_21] : memref<256x128xf32, #tpu.memory_space<vmem>>, vector<256x128xf32>
      tpu.vector_store %arg7[%c0_20, %c0_21], %32 {strides = array<i32>} : memref<256x128xf32, #tpu.memory_space<vmem>>, vector<256x128xf32>,
    } else {
    }
    %c0 = arith.constant 0 : index
    %c0_1 = arith.constant 0 : index
    %3 = vector.load %arg2[%c0, %c0_1] : memref<256x128xf32, #tpu.memory_space<vmem>>, vector<256x128xf32>
    %4 = arith.truncf %3 : vector<256x128xf32> to vector<256x128xbf16>
    %c0_2 = arith.constant 0 : index
    %c0_3 = arith.constant 0 : index
    %5 = vector.load %arg3[%c0_2, %c0_3] : memref<128x512xbf16, #tpu.memory_space<vmem>>, vector<128x512xbf16>
    %cst = arith.constant dense<0.000000e+00> : vector<256x512xf32>
    %6 = tpu.matmul %4, %5, %cst {dimension_numbers = #tpu.dot_dimension_numbers<[1], [0], [0], [1], [0, 0, 1, 1], [], []>} : vector<256x128xbf16>, vector<128x512xbf16>, vector<256x512xf32> -> vector<256x512xf32>
    %c0_4 = arith.constant 0 : index
    %c0_5 = arith.constant 0 : index
    %7 = vector.load %arg4[%c0_4, %c0_5] : memref<1x512xf32, #tpu.memory_space<vmem>>, vector<1x512xf32>
    %8 = vector.broadcast %7 : vector<1x512xf32> to vector<256x512xf32>
    %9 = arith.addf %6, %8 : vector<256x512xf32>
    %10 = arith.mulf %9, %9 : vector<256x512xf32>
    %11 = arith.mulf %10, %9 : vector<256x512xf32>
    %cst_6 = arith.constant 5.000000e-01 : f32
    %12 = vector.broadcast %cst_6 : f32 to vector<256x512xf32>
    %13 = arith.mulf %12, %9 : vector<256x512xf32>
    %cst_7 = arith.constant 4.471500e-02 : f32
    %14 = vector.broadcast %cst_7 : f32 to vector<256x512xf32>
    %15 = arith.mulf %14, %11 : vector<256x512xf32>
    %16 = arith.addf %9, %15 : vector<256x512xf32>
    %cst_8 = arith.constant 0.797884583 : f32
    %17 = vector.broadcast %cst_8 : f32 to vector<256x512xf32>
    %18 = arith.mulf %17, %16 : vector<256x512xf32>
    %19 = math.tanh %18 : vector<256x512xf32>
    %cst_9 = arith.constant 1.000000e+00 : f32
    %20 = vector.broadcast %cst_9 : f32 to vector<256x512xf32>
    %21 = arith.addf %20, %19 : vector<256x512xf32>
    %22 = arith.mulf %13, %21 : vector<256x512xf32>
    %c0_10 = arith.constant 0 : index
    %c0_11 = arith.constant 0 : index
    %23 = vector.load %arg7[%c0_10, %c0_11] : memref<256x128xf32, #tpu.memory_space<vmem>>, vector<256x128xf32>
    %24 = arith.truncf %22 : vector<256x512xf32> to vector<256x512xbf16>
    %c0_12 = arith.constant 0 : index
    %c0_13 = arith.constant 0 : index
    %25 = vector.load %arg5[%c0_12, %c0_13] : memref<512x128xbf16, #tpu.memory_space<vmem>>, vector<512x128xbf16>
    %cst_14 = arith.constant dense<0.000000e+00> : vector<256x128xf32>
    %26 = tpu.matmul %24, %25, %cst_14 {dimension_numbers = #tpu.dot_dimension_numbers<[1], [0], [0], [1], [0, 0, 1, 1], [], []>} : vector<256x512xbf16>, vector<512x128xbf16>, vector<256x128xf32> -> vector<256x128xf32>
    %27 = arith.addf %23, %26 : vector<256x128xf32>
    %c0_15 = arith.constant 0 : index
    %c0_16 = arith.constant 0 : index
    %28 = vector.load %arg7[%c0_15, %c0_16] : memref<256x128xf32, #tpu.memory_space<vmem>>, vector<256x128xf32>
    tpu.vector_store %arg7[%c0_15, %c0_16], %27 {strides = array<i32>} : memref<256x128xf32, #tpu.memory_space<vmem>>, vector<256x128xf32>,
    %c0_i32_17 = arith.constant 0 : i32
    %29 = arith.cmpi eq, %arg1, %c0_i32_17 : i32
    %30 = arith.extui %29 : i1 to i32
    %c0_i32_18 = arith.constant 0 : i32
    %31 = arith.cmpi ne, %30, %c0_i32_18 : i32
    scf.if %31 {
      %c0_19 = arith.constant 0 : index
      %c0_20 = arith.constant 0 : index
      %32 = vector.load %arg7[%c0_19, %c0_20] : memref<256x128xf32, #tpu.memory_space<vmem>>, vector<256x128xf32>
      %c0_21 = arith.constant 0 : index
      %c0_22 = arith.constant 0 : index
      %33 = vector.load %arg6[%c0_21, %c0_22] : memref<1x128xf32, #tpu.memory_space<vmem>>, vector<1x128xf32>
      %34 = vector.broadcast %33 : vector<1x128xf32> to vector<256x128xf32>
      %35 = arith.addf %32, %34 : vector<256x128xf32>
      %c0_23 = arith.constant 0 : index
      %c0_24 = arith.constant 0 : index
      %36 = vector.load %arg7[%c0_23, %c0_24] : memref<256x128xf32, #tpu.memory_space<vmem>>, vector<256x128xf32>
      tpu.vector_store %arg7[%c0_23, %c0_24], %35 {strides = array<i32>} : memref<256x128xf32, #tpu.memory_space<vmem>>, vector<256x128xf32>,
    } else {
    }
    return
  }
  func.func @transform_0(%arg0: i32, %arg1: i32) -> (i32, i32) {
    %c0_i32 = arith.constant 0 : i32
    %c0_i32_0 = arith.constant 0 : i32
    return %arg0, %c0_i32 : i32, i32
  }
  func.func @transform_1(%arg0: i32, %arg1: i32) -> (i32, i32) {
    %c0_i32 = arith.constant 0 : i32
    %c0_i32_0 = arith.constant 0 : i32
    return %c0_i32, %arg1 : i32, i32
  }
  func.func @transform_2(%arg0: i32, %arg1: i32) -> (i32, i32) {
    %c0_i32 = arith.constant 0 : i32
    %c0_i32_0 = arith.constant 0 : i32
    return %c0_i32, %arg1 : i32, i32
  }
  func.func @transform_3(%arg0: i32, %arg1: i32) -> (i32, i32) {
    %c0_i32 = arith.constant 0 : i32
    %c0_i32_0 = arith.constant 0 : i32
    return %arg1, %c0_i32 : i32, i32
  }
  func.func @transform_4(%arg0: i32, %arg1: i32) -> (i32, i32) {
    %c0_i32 = arith.constant 0 : i32
    %c0_i32_0 = arith.constant 0 : i32
    %c0_i32_1 = arith.constant 0 : i32
    return %c0_i32, %c0_i32_0 : i32, i32
  }
  func.func @transform_5(%arg0: i32, %arg1: i32) -> (i32, i32) {
    %c0_i32 = arith.constant 0 : i32
    %c0_i32_0 = arith.constant 0 : i32
    return %arg0, %c0_i32 : i32, i32
  }
}

</mosaic_0001>

<llo_original>
// kernel: mlp_forward.1
$region0: #{mlp_forward.1}
  #allocation0 [shape = 'u32[]', space=smem, size = 0x4, offset = 0x4, fixed_abs, tag = 'smem constant byte address 0x4 - core index']
  #allocation1 [shape = 'u32[72,128]{1,0:T(1,128)}', space=vmem, size = 0x9000, scoped, tag = 'internal scratch']
  %s0 = inlined_call_operand.vmem [shape: f32[256,128], index: 0, kind: input, shape index: {}]
  %s1 = inlined_call_operand.vmem [shape: bf16[128,512], index: 1, kind: input, shape index: {}]
  %s2 = inlined_call_operand.vmem [shape: f32[1,512], index: 2, kind: input, shape index: {}]
  %s3 = inlined_call_operand.vmem [shape: bf16[512,128], index: 3, kind: input, shape index: {}]
  %s4 = inlined_call_operand.vmem [shape: f32[1,128], index: 4, kind: input, shape index: {}]
  %s5 = inlined_call_operand.hbm [shape: f32[256,128], index: 5, kind: output, shape index: {}]
  %s6 = sld [smem:[#allocation0]]
  $region38: #{mlp_forward.1} parent=0
    _
  %s8 = ssub.s32 1, %s6
  %s9 = scalar_select 0, %s8, %s6
  $region1: #{mlp_forward.1} parent=0
    #allocation2 [shape = 'u8[131072]{0}', space=vmem, size = 0x20000, scoped, tag = 'output window, operand 0, single buffered']
    #allocation3 [shape = 's32[1]{0}', space=sflag, size = 0x4, scoped, tag = 'scoped memory for mlp_forward.1']
    %10 = vsyncpa [#allocation3], 0
    // Predicated region
    $region2: #{mlp_forward.1} parent=1 // pred_check
      _
    $region3: #{mlp_forward.1} parent=1 // pred_check_branch
      %12 = sbr.rel (0) target = $region5
    $region4: #{mlp_forward.1} parent=1 // pred_region
      _
    $region5: #{mlp_forward.1} parent=1 // pred_fallthru
      _
    // Predicated region
    $region6: #{mlp_forward.1} parent=1 // pred_check
      _
    $region7: #{mlp_forward.1} parent=1 // pred_check_branch
      %14 = sbr.rel (0) target = $region9
    $region8: #{mlp_forward.1} parent=1 // pred_region
      _
    $region9: #{mlp_forward.1} parent=1 // pred_fallthru
      _
    // Predicated region
    $region10: #{mlp_forward.1} parent=1 // pred_check
      _
    $region11: #{mlp_forward.1} parent=1 // pred_check_branch
      %16 = sbr.rel (0) target = $region13
    $region12: #{mlp_forward.1} parent=1 // pred_region
      _
    $region13: #{mlp_forward.1} parent=1 // pred_fallthru
      _
    // Predicated region
    $region14: #{mlp_forward.1} parent=1 // pred_check
      _
    $region15: #{mlp_forward.1} parent=1 // pred_check_branch
      %18 = sbr.rel (0) target = $region17
    $region16: #{mlp_forward.1} parent=1 // pred_region
      _
    $region17: #{mlp_forward.1} parent=1 // pred_fallthru
      _
    // Predicated region
    $region18: #{mlp_forward.1} parent=1 // pred_check
      _
    $region19: #{mlp_forward.1} parent=1 // pred_check_branch
      %20 = sbr.rel (0) target = $region21
    $region20: #{mlp_forward.1} parent=1 // pred_region
      _
    $region21: #{mlp_forward.1} parent=1 // pred_fallthru
      _
    %p21 = scmp.eq.s32.totalorder 0, 0
    // Predicated region
    $region22: #{mlp_forward.1} parent=1 // pred_check
      %p22 = pneg %p21
    $region23: #{mlp_forward.1} parent=1 // pred_check_branch
      %24 = sbr.rel (%p22) target = $region25
    $region24: #{mlp_forward.1} parent=1 // pred_region
      %25 = vst [vmem:[#allocation2] sm:$0xff] 0.0
      %26 = vst [vmem:[#allocation2 + $0x8] sm:$0xff] 0.0
      %27 = vst [vmem:[#allocation2 + $0x10] sm:$0xff] 0.0
      %28 = vst [vmem:[#allocation2 + $0x18] sm:$0xff] 0.0
      %29 = vst [vmem:[#allocation2 + $0x20] sm:$0xff] 0.0
      %30 = vst [vmem:[#allocation2 + $0x28] sm:$0xff] 0.0
      %31 = vst [vmem:[#allocation2 + $0x30] sm:$0xff] 0.0
      %32 = vst [vmem:[#allocation2 + $0x38] sm:$0xff] 0.0
      %33 = vst [vmem:[#allocation2 + $0x40] sm:$0xff] 0.0
      %34 = vst [vmem:[#allocation2 + $0x48] sm:$0xff] 0.0
      %35 = vst [vmem:[#allocation2 + $0x50] sm:$0xff] 0.0
      %36 = vst [vmem:[#allocation2 + $0x58] sm:$0xff] 0.0
      %37 = vst [vmem:[#allocation2 + $0x60] sm:$0xff] 0.0
      %38 = vst [vmem:[#allocation2 + $0x68] sm:$0xff] 0.0
      %39 = vst [vmem:[#allocation2 + $0x70] sm:$0xff] 0.0
      %40 = vst [vmem:[#allocation2 + $0x78] sm:$0xff] 0.0
      %41 = vst [vmem:[#allocation2 + $0x80] sm:$0xff] 0.0
      %42 = vst [vmem:[#allocation2 + $0x88] sm:$0xff] 0.0
      %43 = vst [vmem:[#allocation2 + $0x90] sm:$0xff] 0.0
      %44 = vst [vmem:[#allocation2 + $0x98] sm:$0xff] 0.0
      %45 = vst [vmem:[#allocation2 + $0xa0] sm:$0xff] 0.0
      %46 = vst [vmem:[#allocation2 + $0xa8] sm:$0xff] 0.0
      %47 = vst [vmem:[#allocation2 + $0xb0] sm:$0xff] 0.0
      %48 = vst [vmem:[#allocation2 + $0xb8] sm:$0xff] 0.0
      %49 = vst [vmem:[#allocation2 + $0xc0] sm:$0xff] 0.0
      %50 = vst [vmem:[#allocation2 + $0xc8] sm:$0xff] 0.0
      %51 = vst [vmem:[#allocation2 + $0xd0] sm:$0xff] 0.0
      %52 = vst [vmem:[#allocation2 + $0xd8] sm:$0xff] 0.0
      %53 = vst [vmem:[#allocation2 + $0xe0] sm:$0xff] 0.0
      %54 = vst [vmem:[#allocation2 + $0xe8] sm:$0xff] 0.0
      %55 = vst [vmem:[#allocation2 + $0xf0] sm:$0xff] 0.0
      %56 = vst [vmem:[#allocation2 + $0xf8] sm:$0xff] 0.0
    $region25: #{mlp_forward.1} parent=1 // pred_fallthru
      _
    %v57 = vld [vmem:[%s0] sm:$0xff]
    %v58 = vld [vmem:[%s0 + $0x8] sm:$0xff]
    %v59 = vld [vmem:[%s0 + $0x10] sm:$0xff]
    %v60 = vld [vmem:[%s0 + $0x18] sm:$0xff]
    %v61 = vld [vmem:[%s0 + $0x20] sm:$0xff]
    %v62 = vld [vmem:[%s0 + $0x28] sm:$0xff]
    %v63 = vld [vmem:[%s0 + $0x30] sm:$0xff]
    %v64 = vld [vmem:[%s0 + $0x38] sm:$0xff]
    %v65 = vld [vmem:[%s0 + $0x40] sm:$0xff]
    %v66 = vld [vmem:[%s0 + $0x48] sm:$0xff]
    %v67 = vld [vmem:[%s0 + $0x50] sm:$0xff]
    %v68 = vld [vmem:[%s0 + $0x58] sm:$0xff]
    %v69 = vld [vmem:[%s0 + $0x60] sm:$0xff]
    %v70 = vld [vmem:[%s0 + $0x68] sm:$0xff]
    %v71 = vld [vmem:[%s0 + $0x70] sm:$0xff]
    %v72 = vld [vmem:[%s0 + $0x78] sm:$0xff]
    %v73 = vld [vmem:[%s0 + $0x80] sm:$0xff]
    %v74 = vld [vmem:[%s0 + $0x88] sm:$0xff]
    %v75 = vld [vmem:[%s0 + $0x90] sm:$0xff]
    %v76 = vld [vmem:[%s0 + $0x98] sm:$0xff]
    %v77 = vld [vmem:[%s0 + $0xa0] sm:$0xff]
    %v78 = vld [vmem:[%s0 + $0xa8] sm:$0xff]
    %v79 = vld [vmem:[%s0 + $0xb0] sm:$0xff]
    %v80 = vld [vmem:[%s0 + $0xb8] sm:$0xff]
    %v81 = vld [vmem:[%s0 + $0xc0] sm:$0xff]
    %v82 = vld [vmem:[%s0 + $0xc8] sm:$0xff]
    %v83 = vld [vmem:[%s0 + $0xd0] sm:$0xff]
    %v84 = vld [vmem:[%s0 + $0xd8] sm:$0xff]
    %v85 = vld [vmem:[%s0 + $0xe0] sm:$0xff]
    %v86 = vld [vmem:[%s0 + $0xe8] sm:$0xff]
    %v87 = vld [vmem:[%s0 + $0xf0] sm:$0xff]
    %v88 = vld [vmem:[%s0 + $0xf8] sm:$0xff]
    %v89 = vpack.c.bf16 %v58, %v57
    %v90 = vpack.c.bf16 %v60, %v59
    %v91 = vpack.c.bf16 %v62, %v61
    %v92 = vpack.c.bf16 %v64, %v63
    %v93 = vpack.c.bf16 %v66, %v65
    %v94 = vpack.c.bf16 %v68, %v67
    %v95 = vpack.c.bf16 %v70, %v69
    %v96 = vpack.c.bf16 %v72, %v71
    %v97 = vpack.c.bf16 %v74, %v73
    %v98 = vpack.c.bf16 %v76, %v75
    %v99 = vpack.c.bf16 %v78, %v77
    %v100 = vpack.c.bf16 %v80, %v79
    %v101 = vpack.c.bf16 %v82, %v81
    %v102 = vpack.c.bf16 %v84, %v83
    %v103 = vpack.c.bf16 %v86, %v85
    %v104 = vpack.c.bf16 %v88, %v87
    %v105 = vld [vmem:[%s1] sm:$0xff]
    %v106 = vld [vmem:[%s1 + $0x8] sm:$0xff]
    %v107 = vld [vmem:[%s1 + $0x10] sm:$0xff]
    %v108 = vld [vmem:[%s1 + $0x18] sm:$0xff]
    %v109 = vld [vmem:[%s1 + $0x20] sm:$0xff]
    %v110 = vld [vmem:[%s1 + $0x28] sm:$0xff]
    %v111 = vld [vmem:[%s1 + $0x30] sm:$0xff]
    %v112 = vld [vmem:[%s1 + $0x38] sm:$0xff]
    %v113 = vld [vmem:[%s1 + $0x40] sm:$0xff]
    %v114 = vld [vmem:[%s1 + $0x48] sm:$0xff]
    %v115 = vld [vmem:[%s1 + $0x50] sm:$0xff]
    %v116 = vld [vmem:[%s1 + $0x58] sm:$0xff]
    %v117 = vld [vmem:[%s1 + $0x60] sm:$0xff]
    %v118 = vld [vmem:[%s1 + $0x68] sm:$0xff]
    %v119 = vld [vmem:[%s1 + $0x70] sm:$0xff]
    %v120 = vld [vmem:[%s1 + $0x78] sm:$0xff]
    %v121 = vld [vmem:[%s1 + $0x80] sm:$0xff]
    %v122 = vld [vmem:[%s1 + $0x88] sm:$0xff]
    %v123 = vld [vmem:[%s1 + $0x90] sm:$0xff]
    %v124 = vld [vmem:[%s1 + $0x98] sm:$0xff]
    %v125 = vld [vmem:[%s1 + $0xa0] sm:$0xff]
    %v126 = vld [vmem:[%s1 + $0xa8] sm:$0xff]
    %v127 = vld [vmem:[%s1 + $0xb0] sm:$0xff]
    %v128 = vld [vmem:[%s1 + $0xb8] sm:$0xff]
    %v129 = vld [vmem:[%s1 + $0xc0] sm:$0xff]
    %v130 = vld [vmem:[%s1 + $0xc8] sm:$0xff]
    %v131 = vld [vmem:[%s1 + $0xd0] sm:$0xff]
    %v132 = vld [vmem:[%s1 + $0xd8] sm:$0xff]
    %v133 = vld [vmem:[%s1 + $0xe0] sm:$0xff]
    %v134 = vld [vmem:[%s1 + $0xe8] sm:$0xff]
    %v135 = vld [vmem:[%s1 + $0xf0] sm:$0xff]
    %v136 = vld [vmem:[%s1 + $0xf8] sm:$0xff]
    %v137 = vld [vmem:[%s2] sm:$0xf]
    %v139 = vperm.slane %v137, 0
    %v140 = vperm.slane %v137, 1
    %v141 = vperm.slane %v137, 2
    %v142 = vperm.slane %v137, 3
    %v179 = vunpack.c.l.b16 %v105
    %v180 = vunpack.c.h.b16 %v105
    %v181 = vunpack.c.l.b16 %v106
    %v182 = vunpack.c.h.b16 %v106
    %v183 = vunpack.c.l.b16 %v107
    %v184 = vunpack.c.h.b16 %v107
    %v185 = vunpack.c.l.b16 %v108
    %v186 = vunpack.c.h.b16 %v108
    %v187 = vunpack.c.l.b16 %v109
    %v188 = vunpack.c.h.b16 %v109
    %v189 = vunpack.c.l.b16 %v110
    %v190 = vunpack.c.h.b16 %v110
    %v191 = vunpack.c.l.b16 %v111
    %v192 = vunpack.c.h.b16 %v111
    %v193 = vunpack.c.l.b16 %v112
    %v194 = vunpack.c.h.b16 %v112
    %v195 = vunpack.c.l.b16 %v113
    %v196 = vunpack.c.h.b16 %v113
    %v197 = vunpack.c.l.b16 %v114
    %v198 = vunpack.c.h.b16 %v114
    %v199 = vunpack.c.l.b16 %v115
    %v200 = vunpack.c.h.b16 %v115
    %v201 = vunpack.c.l.b16 %v116
    %v202 = vunpack.c.h.b16 %v116
    %v203 = vunpack.c.l.b16 %v117
    %v204 = vunpack.c.h.b16 %v117
    %v205 = vunpack.c.l.b16 %v118
    %v206 = vunpack.c.h.b16 %v118
    %v207 = vunpack.c.l.b16 %v119
    %v208 = vunpack.c.h.b16 %v119
    %v209 = vunpack.c.l.b16 %v120
    %v210 = vunpack.c.h.b16 %v120
    %v211 = vunpack.c.l.b16 %v121
    %v212 = vunpack.c.h.b16 %v121
    %v213 = vunpack.c.l.b16 %v122
    %v214 = vunpack.c.h.b16 %v122
    %v215 = vunpack.c.l.b16 %v123
    %v216 = vunpack.c.h.b16 %v123
    %v217 = vunpack.c.l.b16 %v124
    %v218 = vunpack.c.h.b16 %v124
    %v219 = vunpack.c.l.b16 %v125
    %v220 = vunpack.c.h.b16 %v125
    %v221 = vunpack.c.l.b16 %v126
    %v222 = vunpack.c.h.b16 %v126
    %v223 = vunpack.c.l.b16 %v127
    %v224 = vunpack.c.h.b16 %v127
    %v225 = vunpack.c.l.b16 %v128
    %v226 = vunpack.c.h.b16 %v128
    %v227 = vunpack.c.l.b16 %v129
    %v228 = vunpack.c.h.b16 %v129
    %v229 = vunpack.c.l.b16 %v130
    %v230 = vunpack.c.h.b16 %v130
    %v231 = vunpack.c.l.b16 %v131
    %v232 = vunpack.c.h.b16 %v131
    %v233 = vunpack.c.l.b16 %v132
    %v234 = vunpack.c.h.b16 %v132
    %v235 = vunpack.c.l.b16 %v133
    %v236 = vunpack.c.h.b16 %v133
    %v237 = vunpack.c.l.b16 %v134
    %v238 = vunpack.c.h.b16 %v134
    %v239 = vunpack.c.l.b16 %v135
    %v240 = vunpack.c.h.b16 %v135
    %v241 = vunpack.c.l.b16 %v136
    %v242 = vunpack.c.h.b16 %v136
    %v243 = vpack.c.b16 %v183, %v179
    %v244 = vpack.c.b16 %v184, %v180
    %v245 = vpack.c.b16 %v185, %v181
    %v246 = vpack.c.b16 %v186, %v182
    %v247 = vpack.c.b16 %v191, %v187
    %v248 = vpack.c.b16 %v192, %v188
    %v249 = vpack.c.b16 %v193, %v189
    %v250 = vpack.c.b16 %v194, %v190
    %v251 = vpack.c.b16 %v199, %v195
    %v252 = vpack.c.b16 %v200, %v196
    %v253 = vpack.c.b16 %v201, %v197
    %v254 = vpack.c.b16 %v202, %v198
    %v255 = vpack.c.b16 %v207, %v203
    %v256 = vpack.c.b16 %v208, %v204
    %v257 = vpack.c.b16 %v209, %v205
    %v258 = vpack.c.b16 %v210, %v206
    %v259 = vpack.c.b16 %v215, %v211
    %v260 = vpack.c.b16 %v216, %v212
    %v261 = vpack.c.b16 %v217, %v213
    %v262 = vpack.c.b16 %v218, %v214
    %v263 = vpack.c.b16 %v223, %v219
    %v264 = vpack.c.b16 %v224, %v220
    %v265 = vpack.c.b16 %v225, %v221
    %v266 = vpack.c.b16 %v226, %v222
    %v267 = vpack.c.b16 %v231, %v227
    %v268 = vpack.c.b16 %v232, %v228
    %v269 = vpack.c.b16 %v233, %v229
    %v270 = vpack.c.b16 %v234, %v230
    %v271 = vpack.c.b16 %v239, %v235
    %v272 = vpack.c.b16 %v240, %v236
    %v273 = vpack.c.b16 %v241, %v237
    %v274 = vpack.c.b16 %v242, %v238
    %307 = vmatpush.bf16.msra.mxu0 %v271
    %308 = vmatpush.bf16.msra.mxu0 %v267
    %309 = vmatpush.bf16.msra.mxu0 %v263
    %310 = vmatpush.bf16.msra.mxu0 %v259
    %311 = vmatpush.bf16.msra.mxu0 %v255
    %312 = vmatpush.bf16.msra.mxu0 %v251
    %313 = vmatpush.bf16.msra.mxu0 %v247
    %314 = vmatpush.bf16.msra.mxu0 %v243
    %315 = vmatmul.bf16.gmra.mxu0 %v89
    %v316 = vpop.f32.mrf.mxu0
    %v317 = vadd.f32 %v139, %v316
    %v318 = vpop.f32.mrf.mxu0
    %v319 = vadd.f32 %v139, %v318
    %320 = vmatmul.bf16.gmra.mxu0 %v90
    %v321 = vpop.f32.mrf.mxu0
    %v322 = vadd.f32 %v139, %v321
    %v323 = vpop.f32.mrf.mxu0
    %v324 = vadd.f32 %v139, %v323
    %325 = vmatmul.bf16.gmra.mxu0 %v91
    %v326 = vpop.f32.mrf.mxu0
    %v327 = vadd.f32 %v139, %v326
    %v328 = vpop.f32.mrf.mxu0
    %v329 = vadd.f32 %v139, %v328
    %330 = vmatmul.bf16.gmra.mxu0 %v92
    %v331 = vpop.f32.mrf.mxu0
    %v332 = vadd.f32 %v139, %v331
    %v333 = vpop.f32.mrf.mxu0
    %v334 = vadd.f32 %v139, %v333
    %335 = vmatmul.bf16.gmra.mxu0 %v93
    %v336 = vpop.f32.mrf.mxu0
    %v337 = vadd.f32 %v139, %v336
    %v338 = vpop.f32.mrf.mxu0
    %v339 = vadd.f32 %v139, %v338
    %340 = vmatmul.bf16.gmra.mxu0 %v94
    %v341 = vpop.f32.mrf.mxu0
    %v342 = vadd.f32 %v139, %v341
    %v343 = vpop.f32.mrf.mxu0
    %v344 = vadd.f32 %v139, %v343
    %345 = vmatmul.bf16.gmra.mxu0 %v95
    %v346 = vpop.f32.mrf.mxu0
    %v347 = vadd.f32 %v139, %v346
    %v348 = vpop.f32.mrf.mxu0
    %v349 = vadd.f32 %v139, %v348
    %350 = vmatmul.bf16.gmra.mxu0 %v96
    %v351 = vpop.f32.mrf.mxu0
    %v352 = vadd.f32 %v139, %v351
    %v353 = vpop.f32.mrf.mxu0
    %v354 = vadd.f32 %v139, %v353
    %355 = vmatmul.bf16.gmra.mxu0 %v97
    %v356 = vpop.f32.mrf.mxu0
    %v357 = vadd.f32 %v139, %v356
    %v358 = vpop.f32.mrf.mxu0
    %v359 = vadd.f32 %v139, %v358
    %360 = vmatmul.bf16.gmra.mxu0 %v98
    %v361 = vpop.f32.mrf.mxu0
    %v362 = vadd.f32 %v139, %v361
    %v363 = vpop.f32.mrf.mxu0
    %v364 = vadd.f32 %v139, %v363
    %365 = vmatmul.bf16.gmra.mxu0 %v99
    %v366 = vpop.f32.mrf.mxu0
    %v367 = vadd.f32 %v139, %v366
    %v368 = vpop.f32.mrf.mxu0
    %v369 = vadd.f32 %v139, %v368
    %370 = vmatmul.bf16.gmra.mxu0 %v100
    %v371 = vpop.f32.mrf.mxu0
    %v372 = vadd.f32 %v139, %v371
    %v373 = vpop.f32.mrf.mxu0
    %v374 = vadd.f32 %v139, %v373
    %375 = vmatmul.bf16.gmra.mxu0 %v101
    %v376 = vpop.f32.mrf.mxu0
    %v377 = vadd.f32 %v139, %v376
    %v378 = vpop.f32.mrf.mxu0
    %v379 = vadd.f32 %v139, %v378
    %380 = vmatmul.bf16.gmra.mxu0 %v102
    %v381 = vpop.f32.mrf.mxu0
    %v382 = vadd.f32 %v139, %v381
    %v383 = vpop.f32.mrf.mxu0
    %v384 = vadd.f32 %v139, %v383
    %385 = vmatmul.bf16.gmra.mxu0 %v103
    %v386 = vpop.f32.mrf.mxu0
    %v387 = vadd.f32 %v139, %v386
    %v388 = vpop.f32.mrf.mxu0
    %v389 = vadd.f32 %v139, %v388
    %390 = vmatmul.bf16.gmra.mxu0 %v104
    %v391 = vpop.f32.mrf.mxu0
    %v392 = vadd.f32 %v139, %v391
    %v393 = vpop.f32.mrf.mxu0
    %v394 = vadd.f32 %v139, %v393
    %395 = vdwg.mxu0
    %396 = vmatpush.bf16.msra.mxu0 %v272
    %397 = vmatpush.bf16.msra.mxu0 %v268
    %398 = vmatpush.bf16.msra.mxu0 %v264
    %399 = vmatpush.bf16.msra.mxu0 %v260
    %400 = vmatpush.bf16.msra.mxu0 %v256
    %401 = vmatpush.bf16.msra.mxu0 %v252
    %402 = vmatpush.bf16.msra.mxu0 %v248
    %403 = vmatpush.bf16.msra.mxu0 %v244
    %404 = vmatmul.bf16.gmra.mxu0 %v89
    %v405 = vpop.f32.mrf.mxu0
    %v406 = vadd.f32 %v140, %v405
    %v407 = vpop.f32.mrf.mxu0
    %v408 = vadd.f32 %v140, %v407
    %409 = vmatmul.bf16.gmra.mxu0 %v90
    %v410 = vpop.f32.mrf.mxu0
    %v411 = vadd.f32 %v140, %v410
    %v412 = vpop.f32.mrf.mxu0
    %v413 = vadd.f32 %v140, %v412
    %414 = vmatmul.bf16.gmra.mxu0 %v91
    %v415 = vpop.f32.mrf.mxu0
    %v416 = vadd.f32 %v140, %v415
    %v417 = vpop.f32.mrf.mxu0
    %v418 = vadd.f32 %v140, %v417
    %419 = vmatmul.bf16.gmra.mxu0 %v92
    %v420 = vpop.f32.mrf.mxu0
    %v421 = vadd.f32 %v140, %v420
    %v422 = vpop.f32.mrf.mxu0
    %v423 = vadd.f32 %v140, %v422
    %424 = vmatmul.bf16.gmra.mxu0 %v93
    %v425 = vpop.f32.mrf.mxu0
    %v426 = vadd.f32 %v140, %v425
    %v427 = vpop.f32.mrf.mxu0
    %v428 = vadd.f32 %v140, %v427
    %429 = vmatmul.bf16.gmra.mxu0 %v94
    %v430 = vpop.f32.mrf.mxu0
    %v431 = vadd.f32 %v140, %v430
    %v432 = vpop.f32.mrf.mxu0
    %v433 = vadd.f32 %v140, %v432
    %434 = vmatmul.bf16.gmra.mxu0 %v95
    %v435 = vpop.f32.mrf.mxu0
    %v436 = vadd.f32 %v140, %v435
    %v437 = vpop.f32.mrf.mxu0
    %v438 = vadd.f32 %v140, %v437
    %439 = vmatmul.bf16.gmra.mxu0 %v96
    %v440 = vpop.f32.mrf.mxu0
    %v441 = vadd.f32 %v140, %v440
    %v442 = vpop.f32.mrf.mxu0
    %v443 = vadd.f32 %v140, %v442
    %444 = vmatmul.bf16.gmra.mxu0 %v97
    %v445 = vpop.f32.mrf.mxu0
    %v446 = vadd.f32 %v140, %v445
    %v447 = vpop.f32.mrf.mxu0
    %v448 = vadd.f32 %v140, %v447
    %449 = vmatmul.bf16.gmra.mxu0 %v98
    %v450 = vpop.f32.mrf.mxu0
    %v451 = vadd.f32 %v140, %v450
    %v452 = vpop.f32.mrf.mxu0
    %v453 = vadd.f32 %v140, %v452
    %454 = vmatmul.bf16.gmra.mxu0 %v99
    %v455 = vpop.f32.mrf.mxu0
    %v456 = vadd.f32 %v140, %v455
    %v457 = vpop.f32.mrf.mxu0
    %v458 = vadd.f32 %v140, %v457
    %459 = vmatmul.bf16.gmra.mxu0 %v100
    %v460 = vpop.f32.mrf.mxu0
    %v461 = vadd.f32 %v140, %v460
    %v462 = vpop.f32.mrf.mxu0
    %v463 = vadd.f32 %v140, %v462
    %464 = vmatmul.bf16.gmra.mxu0 %v101
    %v465 = vpop.f32.mrf.mxu0
    %v466 = vadd.f32 %v140, %v465
    %v467 = vpop.f32.mrf.mxu0
    %v468 = vadd.f32 %v140, %v467
    %469 = vmatmul.bf16.gmra.mxu0 %v102
    %v470 = vpop.f32.mrf.mxu0
    %v471 = vadd.f32 %v140, %v470
    %v472 = vpop.f32.mrf.mxu0
    %v473 = vadd.f32 %v140, %v472
    %474 = vmatmul.bf16.gmra.mxu0 %v103
    %v475 = vpop.f32.mrf.mxu0
    %v476 = vadd.f32 %v140, %v475
    %v477 = vpop.f32.mrf.mxu0
    %v478 = vadd.f32 %v140, %v477
    %479 = vmatmul.bf16.gmra.mxu0 %v104
    %v480 = vpop.f32.mrf.mxu0
    %v481 = vadd.f32 %v140, %v480
    %v482 = vpop.f32.mrf.mxu0
    %v483 = vadd.f32 %v140, %v482
    %484 = vdwg.mxu0
    %485 = vmatpush.bf16.msra.mxu0 %v273
    %486 = vmatpush.bf16.msra.mxu0 %v269
    %487 = vmatpush.bf16.msra.mxu0 %v265
    %488 = vmatpush.bf16.msra.mxu0 %v261
    %489 = vmatpush.bf16.msra.mxu0 %v257
    %490 = vmatpush.bf16.msra.mxu0 %v253
    %491 = vmatpush.bf16.msra.mxu0 %v249
    %492 = vmatpush.bf16.msra.mxu0 %v245
    %493 = vmatmul.bf16.gmra.mxu0 %v89
    %v494 = vpop.f32.mrf.mxu0
    %v495 = vadd.f32 %v141, %v494
    %v496 = vpop.f32.mrf.mxu0
    %v497 = vadd.f32 %v141, %v496
    %498 = vmatmul.bf16.gmra.mxu0 %v90
    %v499 = vpop.f32.mrf.mxu0
    %v500 = vadd.f32 %v141, %v499
    %v501 = vpop.f32.mrf.mxu0
    %v502 = vadd.f32 %v141, %v501
    %503 = vmatmul.bf16.gmra.mxu0 %v91
    %v504 = vpop.f32.mrf.mxu0
    %v505 = vadd.f32 %v141, %v504
    %v506 = vpop.f32.mrf.mxu0
    %v507 = vadd.f32 %v141, %v506
    %508 = vmatmul.bf16.gmra.mxu0 %v92
    %v509 = vpop.f32.mrf.mxu0
    %v510 = vadd.f32 %v141, %v509
    %v511 = vpop.f32.mrf.mxu0
    %v512 = vadd.f32 %v141, %v511
    %513 = vmatmul.bf16.gmra.mxu0 %v93
    %v514 = vpop.f32.mrf.mxu0
    %v515 = vadd.f32 %v141, %v514
    %v516 = vpop.f32.mrf.mxu0
    %v517 = vadd.f32 %v141, %v516
    %518 = vmatmul.bf16.gmra.mxu0 %v94
    %v519 = vpop.f32.mrf.mxu0
    %v520 = vadd.f32 %v141, %v519
    %v521 = vpop.f32.mrf.mxu0
    %v522 = vadd.f32 %v141, %v521
    %523 = vmatmul.bf16.gmra.mxu0 %v95
    %v524 = vpop.f32.mrf.mxu0
    %v525 = vadd.f32 %v141, %v524
    %v526 = vpop.f32.mrf.mxu0
    %v527 = vadd.f32 %v141, %v526
    %528 = vmatmul.bf16.gmra.mxu0 %v96
    %v529 = vpop.f32.mrf.mxu0
    %v530 = vadd.f32 %v141, %v529
    %v531 = vpop.f32.mrf.mxu0
    %v532 = vadd.f32 %v141, %v531
    %533 = vmatmul.bf16.gmra.mxu0 %v97
    %v534 = vpop.f32.mrf.mxu0
    %v535 = vadd.f32 %v141, %v534
    %v536 = vpop.f32.mrf.mxu0
    %v537 = vadd.f32 %v141, %v536
    %538 = vmatmul.bf16.gmra.mxu0 %v98
    %v539 = vpop.f32.mrf.mxu0
    %v540 = vadd.f32 %v141, %v539
    %v541 = vpop.f32.mrf.mxu0
    %v542 = vadd.f32 %v141, %v541
    %543 = vmatmul.bf16.gmra.mxu0 %v99
    %v544 = vpop.f32.mrf.mxu0
    %v545 = vadd.f32 %v141, %v544
    %v546 = vpop.f32.mrf.mxu0
    %v547 = vadd.f32 %v141, %v546
    %548 = vmatmul.bf16.gmra.mxu0 %v100
    %v549 = vpop.f32.mrf.mxu0
    %v550 = vadd.f32 %v141, %v549
    %v551 = vpop.f32.mrf.mxu0
    %v552 = vadd.f32 %v141, %v551
    %553 = vmatmul.bf16.gmra.mxu0 %v101
    %v554 = vpop.f32.mrf.mxu0
    %v555 = vadd.f32 %v141, %v554
    %v556 = vpop.f32.mrf.mxu0
    %v557 = vadd.f32 %v141, %v556
    %558 = vmatmul.bf16.gmra.mxu0 %v102
    %v559 = vpop.f32.mrf.mxu0
    %v560 = vadd.f32 %v141, %v559
    %v561 = vpop.f32.mrf.mxu0
    %v562 = vadd.f32 %v141, %v561
    %563 = vmatmul.bf16.gmra.mxu0 %v103
    %v564 = vpop.f32.mrf.mxu0
    %v565 = vadd.f32 %v141, %v564
    %v566 = vpop.f32.mrf.mxu0
    %v567 = vadd.f32 %v141, %v566
    %568 = vmatmul.bf16.gmra.mxu0 %v104
    %v569 = vpop.f32.mrf.mxu0
    %v570 = vadd.f32 %v141, %v569
    %v571 = vpop.f32.mrf.mxu0
    %v572 = vadd.f32 %v141, %v571
    %573 = vdwg.mxu0
    %574 = vmatpush.bf16.msra.mxu0 %v274
    %575 = vmatpush.bf16.msra.mxu0 %v270
    %576 = vmatpush.bf16.msra.mxu0 %v266
    %577 = vmatpush.bf16.msra.mxu0 %v262
    %578 = vmatpush.bf16.msra.mxu0 %v258
    %579 = vmatpush.bf16.msra.mxu0 %v254
    %580 = vmatpush.bf16.msra.mxu0 %v250
    %581 = vmatpush.bf16.msra.mxu0 %v246
    %582 = vmatmul.bf16.gmra.mxu0 %v89
    %v583 = vpop.f32.mrf.mxu0
    %v584 = vadd.f32 %v142, %v583
    %v585 = vpop.f32.mrf.mxu0
    %v586 = vadd.f32 %v142, %v585
    %587 = vmatmul.bf16.gmra.mxu0 %v90
    %v588 = vpop.f32.mrf.mxu0
    %v589 = vadd.f32 %v142, %v588
    %v590 = vpop.f32.mrf.mxu0
    %v591 = vadd.f32 %v142, %v590
    %592 = vmatmul.bf16.gmra.mxu0 %v91
    %v593 = vpop.f32.mrf.mxu0
    %v594 = vadd.f32 %v142, %v593
    %v595 = vpop.f32.mrf.mxu0
    %v596 = vadd.f32 %v142, %v595
    %597 = vmatmul.bf16.gmra.mxu0 %v92
    %v598 = vpop.f32.mrf.mxu0
    %v599 = vadd.f32 %v142, %v598
    %v600 = vpop.f32.mrf.mxu0
    %v601 = vadd.f32 %v142, %v600
    %602 = vmatmul.bf16.gmra.mxu0 %v93
    %v603 = vpop.f32.mrf.mxu0
    %v604 = vadd.f32 %v142, %v603
    %v605 = vpop.f32.mrf.mxu0
    %v606 = vadd.f32 %v142, %v605
    %607 = vmatmul.bf16.gmra.mxu0 %v94
    %v608 = vpop.f32.mrf.mxu0
    %v609 = vadd.f32 %v142, %v608
    %v610 = vpop.f32.mrf.mxu0
    %v611 = vadd.f32 %v142, %v610
    %612 = vmatmul.bf16.gmra.mxu0 %v95
    %v613 = vpop.f32.mrf.mxu0
    %v614 = vadd.f32 %v142, %v613
    %v615 = vpop.f32.mrf.mxu0
    %v616 = vadd.f32 %v142, %v615
    %617 = vmatmul.bf16.gmra.mxu0 %v96
    %v618 = vpop.f32.mrf.mxu0
    %v619 = vadd.f32 %v142, %v618
    %v620 = vpop.f32.mrf.mxu0
    %v621 = vadd.f32 %v142, %v620
    %622 = vmatmul.bf16.gmra.mxu0 %v97
    %v623 = vpop.f32.mrf.mxu0
    %v624 = vadd.f32 %v142, %v623
    %v625 = vpop.f32.mrf.mxu0
    %v626 = vadd.f32 %v142, %v625
    %627 = vmatmul.bf16.gmra.mxu0 %v98
    %v628 = vpop.f32.mrf.mxu0
    %v629 = vadd.f32 %v142, %v628
    %v630 = vpop.f32.mrf.mxu0
    %v631 = vadd.f32 %v142, %v630
    %632 = vmatmul.bf16.gmra.mxu0 %v99
    %v633 = vpop.f32.mrf.mxu0
    %v634 = vadd.f32 %v142, %v633
    %v635 = vpop.f32.mrf.mxu0
    %v636 = vadd.f32 %v142, %v635
    %637 = vmatmul.bf16.gmra.mxu0 %v100
    %v638 = vpop.f32.mrf.mxu0
    %v639 = vadd.f32 %v142, %v638
    %v640 = vpop.f32.mrf.mxu0
    %v641 = vadd.f32 %v142, %v640
    %642 = vmatmul.bf16.gmra.mxu0 %v101
    %v643 = vpop.f32.mrf.mxu0
    %v644 = vadd.f32 %v142, %v643
    %v645 = vpop.f32.mrf.mxu0
    %v646 = vadd.f32 %v142, %v645
    %647 = vmatmul.bf16.gmra.mxu0 %v102
    %v648 = vpop.f32.mrf.mxu0
    %v649 = vadd.f32 %v142, %v648
    %v650 = vpop.f32.mrf.mxu0
    %v651 = vadd.f32 %v142, %v650
    %652 = vmatmul.bf16.gmra.mxu0 %v103
    %v653 = vpop.f32.mrf.mxu0
    %v654 = vadd.f32 %v142, %v653
    %v655 = vpop.f32.mrf.mxu0
    %v656 = vadd.f32 %v142, %v655
    %657 = vmatmul.bf16.gmra.mxu0 %v104
    %v658 = vpop.f32.mrf.mxu0
    %v659 = vadd.f32 %v142, %v658
    %v660 = vpop.f32.mrf.mxu0
    %v661 = vadd.f32 %v142, %v660
    %662 = vdwg.mxu0
    %v663 = vmul.f32 %v317, %v317
    %v664 = vmul.f32 %v406, %v406
    %v665 = vmul.f32 %v495, %v495
    %v666 = vmul.f32 %v584, %v584
    %v667 = vmul.f32 %v319, %v319
    %v668 = vmul.f32 %v408, %v408
    %v669 = vmul.f32 %v497, %v497
    %v670 = vmul.f32 %v586, %v586
    %v671 = vmul.f32 %v322, %v322
    %v672 = vmul.f32 %v411, %v411
    %v673 = vmul.f32 %v500, %v500
    %v674 = vmul.f32 %v589, %v589
    %v675 = vmul.f32 %v324, %v324
    %v676 = vmul.f32 %v413, %v413
    %v677 = vmul.f32 %v502, %v502
    %v678 = vmul.f32 %v591, %v591
    %v679 = vmul.f32 %v327, %v327
    %v680 = vmul.f32 %v416, %v416
    %v681 = vmul.f32 %v505, %v505
    %v682 = vmul.f32 %v594, %v594
    %v683 = vmul.f32 %v329, %v329
    %v684 = vmul.f32 %v418, %v418
    %v685 = vmul.f32 %v507, %v507
    %v686 = vmul.f32 %v596, %v596
    %v687 = vmul.f32 %v332, %v332
    %v688 = vmul.f32 %v421, %v421
    %v689 = vmul.f32 %v510, %v510
    %v690 = vmul.f32 %v599, %v599
    %v691 = vmul.f32 %v334, %v334
    %v692 = vmul.f32 %v423, %v423
    %v693 = vmul.f32 %v512, %v512
    %v694 = vmul.f32 %v601, %v601
    %v695 = vmul.f32 %v337, %v337
    %v696 = vmul.f32 %v426, %v426
    %v697 = vmul.f32 %v515, %v515
    %v698 = vmul.f32 %v604, %v604
    %v699 = vmul.f32 %v339, %v339
    %v700 = vmul.f32 %v428, %v428
    %v701 = vmul.f32 %v517, %v517
    %v702 = vmul.f32 %v606, %v606
    %v703 = vmul.f32 %v342, %v342
    %v704 = vmul.f32 %v431, %v431
    %v705 = vmul.f32 %v520, %v520
    %v706 = vmul.f32 %v609, %v609
    %v707 = vmul.f32 %v344, %v344
    %v708 = vmul.f32 %v433, %v433
    %v709 = vmul.f32 %v522, %v522
    %v710 = vmul.f32 %v611, %v611
    %v711 = vmul.f32 %v347, %v347
    %v712 = vmul.f32 %v436, %v436
    %v713 = vmul.f32 %v525, %v525
    %v714 = vmul.f32 %v614, %v614
    %v715 = vmul.f32 %v349, %v349
    %v716 = vmul.f32 %v438, %v438
    %v717 = vmul.f32 %v527, %v527
    %v718 = vmul.f32 %v616, %v616
    %v719 = vmul.f32 %v352, %v352
    %v720 = vmul.f32 %v441, %v441
    %v721 = vmul.f32 %v530, %v530
    %v722 = vmul.f32 %v619, %v619
    %v723 = vmul.f32 %v354, %v354
    %v724 = vmul.f32 %v443, %v443
    %v725 = vmul.f32 %v532, %v532
    %v726 = vmul.f32 %v621, %v621
    %v727 = vmul.f32 %v357, %v357
    %v728 = vmul.f32 %v446, %v446
    %v729 = vmul.f32 %v535, %v535
    %v730 = vmul.f32 %v624, %v624
    %v731 = vmul.f32 %v359, %v359
    %v732 = vmul.f32 %v448, %v448
    %v733 = vmul.f32 %v537, %v537
    %v734 = vmul.f32 %v626, %v626
    %v735 = vmul.f32 %v362, %v362
    %v736 = vmul.f32 %v451, %v451
    %v737 = vmul.f32 %v540, %v540
    %v738 = vmul.f32 %v629, %v629
    %v739 = vmul.f32 %v364, %v364
    %v740 = vmul.f32 %v453, %v453
    %v741 = vmul.f32 %v542, %v542
    %v742 = vmul.f32 %v631, %v631
    %v743 = vmul.f32 %v367, %v367
    %v744 = vmul.f32 %v456, %v456
    %v745 = vmul.f32 %v545, %v545
    %v746 = vmul.f32 %v634, %v634
    %v747 = vmul.f32 %v369, %v369
    %v748 = vmul.f32 %v458, %v458
    %v749 = vmul.f32 %v547, %v547
    %v750 = vmul.f32 %v636, %v636
    %v751 = vmul.f32 %v372, %v372
    %v752 = vmul.f32 %v461, %v461
    %v753 = vmul.f32 %v550, %v550
    %v754 = vmul.f32 %v639, %v639
    %v755 = vmul.f32 %v374, %v374
    %v756 = vmul.f32 %v463, %v463
    %v757 = vmul.f32 %v552, %v552
    %v758 = vmul.f32 %v641, %v641
    %v759 = vmul.f32 %v377, %v377
    %v760 = vmul.f32 %v466, %v466
    %v761 = vmul.f32 %v555, %v555
    %v762 = vmul.f32 %v644, %v644
    %v763 = vmul.f32 %v379, %v379
    %v764 = vmul.f32 %v468, %v468
    %v765 = vmul.f32 %v557, %v557
    %v766 = vmul.f32 %v646, %v646
    %v767 = vmul.f32 %v382, %v382
    %v768 = vmul.f32 %v471, %v471
    %v769 = vmul.f32 %v560, %v560
    %v770 = vmul.f32 %v649, %v649
    %v771 = vmul.f32 %v384, %v384
    %v772 = vmul.f32 %v473, %v473
    %v773 = vmul.f32 %v562, %v562
    %v774 = vmul.f32 %v651, %v651
    %v775 = vmul.f32 %v387, %v387
    %v776 = vmul.f32 %v476, %v476
    %v777 = vmul.f32 %v565, %v565
    %v778 = vmul.f32 %v654, %v654
    %v779 = vmul.f32 %v389, %v389
    %v780 = vmul.f32 %v478, %v478
    %v781 = vmul.f32 %v567, %v567
    %v782 = vmul.f32 %v656, %v656
    %v783 = vmul.f32 %v392, %v392
    %v784 = vmul.f32 %v481, %v481
    %v785 = vmul.f32 %v570, %v570
    %v786 = vmul.f32 %v659, %v659
    %v787 = vmul.f32 %v394, %v394
    %v788 = vmul.f32 %v483, %v483
    %v789 = vmul.f32 %v572, %v572
    %v790 = vmul.f32 %v661, %v661
    %v791 = vmul.f32 %v663, %v317
    %v792 = vmul.f32 %v664, %v406
    %v793 = vmul.f32 %v665, %v495
    %v794 = vmul.f32 %v666, %v584
    %v795 = vmul.f32 %v667, %v319
    %v796 = vmul.f32 %v668, %v408
    %v797 = vmul.f32 %v669, %v497
    %v798 = vmul.f32 %v670, %v586
    %v799 = vmul.f32 %v671, %v322
    %v800 = vmul.f32 %v672, %v411
    %v801 = vmul.f32 %v673, %v500
    %v802 = vmul.f32 %v674, %v589
    %v803 = vmul.f32 %v675, %v324
    %v804 = vmul.f32 %v676, %v413
    %v805 = vmul.f32 %v677, %v502
    %v806 = vmul.f32 %v678, %v591
    %v807 = vmul.f32 %v679, %v327
    %v808 = vmul.f32 %v680, %v416
    %v809 = vmul.f32 %v681, %v505
    %v810 = vmul.f32 %v682, %v594
    %v811 = vmul.f32 %v683, %v329
    %v812 = vmul.f32 %v684, %v418
    %v813 = vmul.f32 %v685, %v507
    %v814 = vmul.f32 %v686, %v596
    %v815 = vmul.f32 %v687, %v332
    %v816 = vmul.f32 %v688, %v421
    %v817 = vmul.f32 %v689, %v510
    %v818 = vmul.f32 %v690, %v599
    %v819 = vmul.f32 %v691, %v334
    %v820 = vmul.f32 %v692, %v423
    %v821 = vmul.f32 %v693, %v512
    %v822 = vmul.f32 %v694, %v601
    %v823 = vmul.f32 %v695, %v337
    %v824 = vmul.f32 %v696, %v426
    %v825 = vmul.f32 %v697, %v515
    %v826 = vmul.f32 %v698, %v604
    %v827 = vmul.f32 %v699, %v339
    %v828 = vmul.f32 %v700, %v428
    %v829 = vmul.f32 %v701, %v517
    %v830 = vmul.f32 %v702, %v606
    %v831 = vmul.f32 %v703, %v342
    %v832 = vmul.f32 %v704, %v431
    %v833 = vmul.f32 %v705, %v520
    %v834 = vmul.f32 %v706, %v609
    %v835 = vmul.f32 %v707, %v344
    %v836 = vmul.f32 %v708, %v433
    %v837 = vmul.f32 %v709, %v522
    %v838 = vmul.f32 %v710, %v611
    %v839 = vmul.f32 %v711, %v347
    %v840 = vmul.f32 %v712, %v436
    %v841 = vmul.f32 %v713, %v525
    %v842 = vmul.f32 %v714, %v614
    %v843 = vmul.f32 %v715, %v349
    %v844 = vmul.f32 %v716, %v438
    %v845 = vmul.f32 %v717, %v527
    %v846 = vmul.f32 %v718, %v616
    %v847 = vmul.f32 %v719, %v352
    %v848 = vmul.f32 %v720, %v441
    %v849 = vmul.f32 %v721, %v530
    %v850 = vmul.f32 %v722, %v619
    %v851 = vmul.f32 %v723, %v354
    %v852 = vmul.f32 %v724, %v443
    %v853 = vmul.f32 %v725, %v532
    %v854 = vmul.f32 %v726, %v621
    %v855 = vmul.f32 %v727, %v357
    %v856 = vmul.f32 %v728, %v446
    %v857 = vmul.f32 %v729, %v535
    %v858 = vmul.f32 %v730, %v624
    %v859 = vmul.f32 %v731, %v359
    %v860 = vmul.f32 %v732, %v448
    %v861 = vmul.f32 %v733, %v537
    %v862 = vmul.f32 %v734, %v626
    %v863 = vmul.f32 %v735, %v362
    %v864 = vmul.f32 %v736, %v451
    %v865 = vmul.f32 %v737, %v540
    %v866 = vmul.f32 %v738, %v629
    %v867 = vmul.f32 %v739, %v364
    %v868 = vmul.f32 %v740, %v453
    %v869 = vmul.f32 %v741, %v542
    %v870 = vmul.f32 %v742, %v631
    %v871 = vmul.f32 %v743, %v367
    %v872 = vmul.f32 %v744, %v456
    %v873 = vmul.f32 %v745, %v545
    %v874 = vmul.f32 %v746, %v634
    %v875 = vmul.f32 %v747, %v369
    %v876 = vmul.f32 %v748, %v458
    %v877 = vmul.f32 %v749, %v547
    %v878 = vmul.f32 %v750, %v636
    %v879 = vmul.f32 %v751, %v372
    %v880 = vmul.f32 %v752, %v461
    %v881 = vmul.f32 %v753, %v550
    %v882 = vmul.f32 %v754, %v639
    %v883 = vmul.f32 %v755, %v374
    %v884 = vmul.f32 %v756, %v463
    %v885 = vmul.f32 %v757, %v552
    %v886 = vmul.f32 %v758, %v641
    %v887 = vmul.f32 %v759, %v377
    %v888 = vmul.f32 %v760, %v466
    %v889 = vmul.f32 %v761, %v555
    %v890 = vmul.f32 %v762, %v644
    %v891 = vmul.f32 %v763, %v379
    %v892 = vmul.f32 %v764, %v468
    %v893 = vmul.f32 %v765, %v557
    %v894 = vmul.f32 %v766, %v646
    %v895 = vmul.f32 %v767, %v382
    %v896 = vmul.f32 %v768, %v471
    %v897 = vmul.f32 %v769, %v560
    %v898 = vmul.f32 %v770, %v649
    %v899 = vmul.f32 %v771, %v384
    %v900 = vmul.f32 %v772, %v473
    %v901 = vmul.f32 %v773, %v562
    %v902 = vmul.f32 %v774, %v651
    %v903 = vmul.f32 %v775, %v387
    %v904 = vmul.f32 %v776, %v476
    %v905 = vmul.f32 %v777, %v565
    %v906 = vmul.f32 %v778, %v654
    %v907 = vmul.f32 %v779, %v389
    %v908 = vmul.f32 %v780, %v478
    %v909 = vmul.f32 %v781, %v567
    %v910 = vmul.f32 %v782, %v656
    %v911 = vmul.f32 %v783, %v392
    %v912 = vmul.f32 %v784, %v481
    %v913 = vmul.f32 %v785, %v570
    %v914 = vmul.f32 %v786, %v659
    %v915 = vmul.f32 %v787, %v394
    %v916 = vmul.f32 %v788, %v483
    %v917 = vmul.f32 %v789, %v572
    %v918 = vmul.f32 %v790, %v661
    %v919 = vmul.f32 %v317, 0.5
    %v920 = vmul.f32 %v406, 0.5
    %v921 = vmul.f32 %v495, 0.5
    %v922 = vmul.f32 %v584, 0.5
    %v923 = vmul.f32 %v319, 0.5
    %v924 = vmul.f32 %v408, 0.5
    %v925 = vmul.f32 %v497, 0.5
    %v926 = vmul.f32 %v586, 0.5
    %v927 = vmul.f32 %v322, 0.5
    %v928 = vmul.f32 %v411, 0.5
    %v929 = vmul.f32 %v500, 0.5
    %v930 = vmul.f32 %v589, 0.5
    %v931 = vmul.f32 %v324, 0.5
    %v932 = vmul.f32 %v413, 0.5
    %v933 = vmul.f32 %v502, 0.5
    %v934 = vmul.f32 %v591, 0.5
    %v935 = vmul.f32 %v327, 0.5
    %v936 = vmul.f32 %v416, 0.5
    %v937 = vmul.f32 %v505, 0.5
    %v938 = vmul.f32 %v594, 0.5
    %v939 = vmul.f32 %v329, 0.5
    %v940 = vmul.f32 %v418, 0.5
    %v941 = vmul.f32 %v507, 0.5
    %v942 = vmul.f32 %v596, 0.5
    %v943 = vmul.f32 %v332, 0.5
    %v944 = vmul.f32 %v421, 0.5
    %v945 = vmul.f32 %v510, 0.5
    %v946 = vmul.f32 %v599, 0.5
    %v947 = vmul.f32 %v334, 0.5
    %v948 = vmul.f32 %v423, 0.5
    %v949 = vmul.f32 %v512, 0.5
    %v950 = vmul.f32 %v601, 0.5
    %v951 = vmul.f32 %v337, 0.5
    %v952 = vmul.f32 %v426, 0.5
    %v953 = vmul.f32 %v515, 0.5
    %v954 = vmul.f32 %v604, 0.5
    %v955 = vmul.f32 %v339, 0.5
    %v956 = vmul.f32 %v428, 0.5
    %v957 = vmul.f32 %v517, 0.5
    %v958 = vmul.f32 %v606, 0.5
    %v959 = vmul.f32 %v342, 0.5
    %v960 = vmul.f32 %v431, 0.5
    %v961 = vmul.f32 %v520, 0.5
    %v962 = vmul.f32 %v609, 0.5
    %v963 = vmul.f32 %v344, 0.5
    %v964 = vmul.f32 %v433, 0.5
    %v965 = vmul.f32 %v522, 0.5
    %v966 = vmul.f32 %v611, 0.5
    %v967 = vmul.f32 %v347, 0.5
    %v968 = vmul.f32 %v436, 0.5
    %v969 = vmul.f32 %v525, 0.5
    %v970 = vmul.f32 %v614, 0.5
    %v971 = vmul.f32 %v349, 0.5
    %v972 = vmul.f32 %v438, 0.5
    %v973 = vmul.f32 %v527, 0.5
    %v974 = vmul.f32 %v616, 0.5
    %v975 = vmul.f32 %v352, 0.5
    %v976 = vmul.f32 %v441, 0.5
    %v977 = vmul.f32 %v530, 0.5
    %v978 = vmul.f32 %v619, 0.5
    %v979 = vmul.f32 %v354, 0.5
    %v980 = vmul.f32 %v443, 0.5
    %v981 = vmul.f32 %v532, 0.5
    %v982 = vmul.f32 %v621, 0.5
    %v983 = vmul.f32 %v357, 0.5
    %v984 = vmul.f32 %v446, 0.5
    %v985 = vmul.f32 %v535, 0.5
    %v986 = vmul.f32 %v624, 0.5
    %v987 = vmul.f32 %v359, 0.5
    %v988 = vmul.f32 %v448, 0.5
    %v989 = vmul.f32 %v537, 0.5
    %v990 = vmul.f32 %v626, 0.5
    %v991 = vmul.f32 %v362, 0.5
    %v992 = vmul.f32 %v451, 0.5
    %v993 = vmul.f32 %v540, 0.5
    %v994 = vmul.f32 %v629, 0.5
    %v995 = vmul.f32 %v364, 0.5
    %v996 = vmul.f32 %v453, 0.5
    %v997 = vmul.f32 %v542, 0.5
    %v998 = vmul.f32 %v631, 0.5
    %v999 = vmul.f32 %v367, 0.5
    %v1000 = vmul.f32 %v456, 0.5
    %v1001 = vmul.f32 %v545, 0.5
    %v1002 = vmul.f32 %v634, 0.5
    %v1003 = vmul.f32 %v369, 0.5
    %v1004 = vmul.f32 %v458, 0.5
    %v1005 = vmul.f32 %v547, 0.5
    %v1006 = vmul.f32 %v636, 0.5
    %v1007 = vmul.f32 %v372, 0.5
    %v1008 = vmul.f32 %v461, 0.5
    %v1009 = vmul.f32 %v550, 0.5
    %v1010 = vmul.f32 %v639, 0.5
    %v1011 = vmul.f32 %v374, 0.5
    %v1012 = vmul.f32 %v463, 0.5
    %v1013 = vmul.f32 %v552, 0.5
    %v1014 = vmul.f32 %v641, 0.5
    %v1015 = vmul.f32 %v377, 0.5
    %v1016 = vmul.f32 %v466, 0.5
    %v1017 = vmul.f32 %v555, 0.5
    %v1018 = vmul.f32 %v644, 0.5
    %v1019 = vmul.f32 %v379, 0.5
    %v1020 = vmul.f32 %v468, 0.5
    %v1021 = vmul.f32 %v557, 0.5
    %v1022 = vmul.f32 %v646, 0.5
    %v1023 = vmul.f32 %v382, 0.5
    %v1024 = vmul.f32 %v471, 0.5
    %v1025 = vmul.f32 %v560, 0.5
    %v1026 = vmul.f32 %v649, 0.5
    %v1027 = vmul.f32 %v384, 0.5
    %v1028 = vmul.f32 %v473, 0.5
    %v1029 = vmul.f32 %v562, 0.5
    %v1030 = vmul.f32 %v651, 0.5
    %v1031 = vmul.f32 %v387, 0.5
    %v1032 = vmul.f32 %v476, 0.5
    %v1033 = vmul.f32 %v565, 0.5
    %v1034 = vmul.f32 %v654, 0.5
    %v1035 = vmul.f32 %v389, 0.5
    %v1036 = vmul.f32 %v478, 0.5
    %v1037 = vmul.f32 %v567, 0.5
    %v1038 = vmul.f32 %v656, 0.5
    %v1039 = vmul.f32 %v392, 0.5
    %v1040 = vmul.f32 %v481, 0.5
    %v1041 = vmul.f32 %v570, 0.5
    %v1042 = vmul.f32 %v659, 0.5
    %v1043 = vmul.f32 %v394, 0.5
    %v1044 = vmul.f32 %v483, 0.5
    %v1045 = vmul.f32 %v572, 0.5
    %v1046 = vmul.f32 %v661, 0.5
    %v1047 = vmul.f32 %v791, 0.044715
    %v1048 = vmul.f32 %v792, 0.044715
    %v1049 = vmul.f32 %v793, 0.044715
    %v1050 = vmul.f32 %v794, 0.044715
    %v1051 = vmul.f32 %v795, 0.044715
    %v1052 = vmul.f32 %v796, 0.044715
    %v1053 = vmul.f32 %v797, 0.044715
    %v1054 = vmul.f32 %v798, 0.044715
    %v1055 = vmul.f32 %v799, 0.044715
    %v1056 = vmul.f32 %v800, 0.044715
    %v1057 = vmul.f32 %v801, 0.044715
    %v1058 = vmul.f32 %v802, 0.044715
    %v1059 = vmul.f32 %v803, 0.044715
    %v1060 = vmul.f32 %v804, 0.044715
    %v1061 = vmul.f32 %v805, 0.044715
    %v1062 = vmul.f32 %v806, 0.044715
    %v1063 = vmul.f32 %v807, 0.044715
    %v1064 = vmul.f32 %v808, 0.044715
    %v1065 = vmul.f32 %v809, 0.044715
    %v1066 = vmul.f32 %v810, 0.044715
    %v1067 = vmul.f32 %v811, 0.044715
    %v1068 = vmul.f32 %v812, 0.044715
    %v1069 = vmul.f32 %v813, 0.044715
    %v1070 = vmul.f32 %v814, 0.044715
    %v1071 = vmul.f32 %v815, 0.044715
    %v1072 = vmul.f32 %v816, 0.044715
    %v1073 = vmul.f32 %v817, 0.044715
    %v1074 = vmul.f32 %v818, 0.044715
    %v1075 = vmul.f32 %v819, 0.044715
    %v1076 = vmul.f32 %v820, 0.044715
    %v1077 = vmul.f32 %v821, 0.044715
    %v1078 = vmul.f32 %v822, 0.044715
    %v1079 = vmul.f32 %v823, 0.044715
    %v1080 = vmul.f32 %v824, 0.044715
    %v1081 = vmul.f32 %v825, 0.044715
    %v1082 = vmul.f32 %v826, 0.044715
    %v1083 = vmul.f32 %v827, 0.044715
    %v1084 = vmul.f32 %v828, 0.044715
    %v1085 = vmul.f32 %v829, 0.044715
    %v1086 = vmul.f32 %v830, 0.044715
    %v1087 = vmul.f32 %v831, 0.044715
    %v1088 = vmul.f32 %v832, 0.044715
    %v1089 = vmul.f32 %v833, 0.044715
    %v1090 = vmul.f32 %v834, 0.044715
    %v1091 = vmul.f32 %v835, 0.044715
    %v1092 = vmul.f32 %v836, 0.044715
    %v1093 = vmul.f32 %v837, 0.044715
    %v1094 = vmul.f32 %v838, 0.044715
    %v1095 = vmul.f32 %v839, 0.044715
    %v1096 = vmul.f32 %v840, 0.044715
    %v1097 = vmul.f32 %v841, 0.044715
    %v1098 = vmul.f32 %v842, 0.044715
    %v1099 = vmul.f32 %v843, 0.044715
    %v1100 = vmul.f32 %v844, 0.044715
    %v1101 = vmul.f32 %v845, 0.044715
    %v1102 = vmul.f32 %v846, 0.044715
    %v1103 = vmul.f32 %v847, 0.044715
    %v1104 = vmul.f32 %v848, 0.044715
    %v1105 = vmul.f32 %v849, 0.044715
    %v1106 = vmul.f32 %v850, 0.044715
    %v1107 = vmul.f32 %v851, 0.044715
    %v1108 = vmul.f32 %v852, 0.044715
    %v1109 = vmul.f32 %v853, 0.044715
    %v1110 = vmul.f32 %v854, 0.044715
    %v1111 = vmul.f32 %v855, 0.044715
    %v1112 = vmul.f32 %v856, 0.044715
    %v1113 = vmul.f32 %v857, 0.044715
    %v1114 = vmul.f32 %v858, 0.044715
    %v1115 = vmul.f32 %v859, 0.044715
    %v1116 = vmul.f32 %v860, 0.044715
    %v1117 = vmul.f32 %v861, 0.044715
    %v1118 = vmul.f32 %v862, 0.044715
    %v1119 = vmul.f32 %v863, 0.044715
    %v1120 = vmul.f32 %v864, 0.044715
    %v1121 = vmul.f32 %v865, 0.044715
    %v1122 = vmul.f32 %v866, 0.044715
    %v1123 = vmul.f32 %v867, 0.044715
    %v1124 = vmul.f32 %v868, 0.044715
    %v1125 = vmul.f32 %v869, 0.044715
    %v1126 = vmul.f32 %v870, 0.044715
    %v1127 = vmul.f32 %v871, 0.044715
    %v1128 = vmul.f32 %v872, 0.044715
    %v1129 = vmul.f32 %v873, 0.044715
    %v1130 = vmul.f32 %v874, 0.044715
    %v1131 = vmul.f32 %v875, 0.044715
    %v1132 = vmul.f32 %v876, 0.044715
    %v1133 = vmul.f32 %v877, 0.044715
    %v1134 = vmul.f32 %v878, 0.044715
    %v1135 = vmul.f32 %v879, 0.044715
    %v1136 = vmul.f32 %v880, 0.044715
    %v1137 = vmul.f32 %v881, 0.044715
    %v1138 = vmul.f32 %v882, 0.044715
    %v1139 = vmul.f32 %v883, 0.044715
    %v1140 = vmul.f32 %v884, 0.044715
    %v1141 = vmul.f32 %v885, 0.044715
    %v1142 = vmul.f32 %v886, 0.044715
    %v1143 = vmul.f32 %v887, 0.044715
    %v1144 = vmul.f32 %v888, 0.044715
    %v1145 = vmul.f32 %v889, 0.044715
    %v1146 = vmul.f32 %v890, 0.044715
    %v1147 = vmul.f32 %v891, 0.044715
    %v1148 = vmul.f32 %v892, 0.044715
    %v1149 = vmul.f32 %v893, 0.044715
    %v1150 = vmul.f32 %v894, 0.044715
    %v1151 = vmul.f32 %v895, 0.044715
    %v1152 = vmul.f32 %v896, 0.044715
    %v1153 = vmul.f32 %v897, 0.044715
    %v1154 = vmul.f32 %v898, 0.044715
    %v1155 = vmul.f32 %v899, 0.044715
    %v1156 = vmul.f32 %v900, 0.044715
    %v1157 = vmul.f32 %v901, 0.044715
    %v1158 = vmul.f32 %v902, 0.044715
    %v1159 = vmul.f32 %v903, 0.044715
    %v1160 = vmul.f32 %v904, 0.044715
    %v1161 = vmul.f32 %v905, 0.044715
    %v1162 = vmul.f32 %v906, 0.044715
    %v1163 = vmul.f32 %v907, 0.044715
    %v1164 = vmul.f32 %v908, 0.044715
    %v1165 = vmul.f32 %v909, 0.044715
    %v1166 = vmul.f32 %v910, 0.044715
    %v1167 = vmul.f32 %v911, 0.044715
    %v1168 = vmul.f32 %v912, 0.044715
    %v1169 = vmul.f32 %v913, 0.044715
    %v1170 = vmul.f32 %v914, 0.044715
    %v1171 = vmul.f32 %v915, 0.044715
    %v1172 = vmul.f32 %v916, 0.044715
    %v1173 = vmul.f32 %v917, 0.044715
    %v1174 = vmul.f32 %v918, 0.044715
    %v1175 = vadd.f32 %v317, %v1047
    %v1176 = vadd.f32 %v406, %v1048
    %v1177 = vadd.f32 %v495, %v1049
    %v1178 = vadd.f32 %v584, %v1050
    %v1179 = vadd.f32 %v319, %v1051
    %v1180 = vadd.f32 %v408, %v1052
    %v1181 = vadd.f32 %v497, %v1053
    %v1182 = vadd.f32 %v586, %v1054
    %v1183 = vadd.f32 %v322, %v1055
    %v1184 = vadd.f32 %v411, %v1056
    %v1185 = vadd.f32 %v500, %v1057
    %v1186 = vadd.f32 %v589, %v1058
    %v1187 = vadd.f32 %v324, %v1059
    %v1188 = vadd.f32 %v413, %v1060
    %v1189 = vadd.f32 %v502, %v1061
    %v1190 = vadd.f32 %v591, %v1062
    %v1191 = vadd.f32 %v327, %v1063
    %v1192 = vadd.f32 %v416, %v1064
    %v1193 = vadd.f32 %v505, %v1065
    %v1194 = vadd.f32 %v594, %v1066
    %v1195 = vadd.f32 %v329, %v1067
    %v1196 = vadd.f32 %v418, %v1068
    %v1197 = vadd.f32 %v507, %v1069
    %v1198 = vadd.f32 %v596, %v1070
    %v1199 = vadd.f32 %v332, %v1071
    %v1200 = vadd.f32 %v421, %v1072
    %v1201 = vadd.f32 %v510, %v1073
    %v1202 = vadd.f32 %v599, %v1074
    %v1203 = vadd.f32 %v334, %v1075
    %v1204 = vadd.f32 %v423, %v1076
    %v1205 = vadd.f32 %v512, %v1077
    %v1206 = vadd.f32 %v601, %v1078
    %v1207 = vadd.f32 %v337, %v1079
    %v1208 = vadd.f32 %v426, %v1080
    %v1209 = vadd.f32 %v515, %v1081
    %v1210 = vadd.f32 %v604, %v1082
    %v1211 = vadd.f32 %v339, %v1083
    %v1212 = vadd.f32 %v428, %v1084
    %v1213 = vadd.f32 %v517, %v1085
    %v1214 = vadd.f32 %v606, %v1086
    %v1215 = vadd.f32 %v342, %v1087
    %v1216 = vadd.f32 %v431, %v1088
    %v1217 = vadd.f32 %v520, %v1089
    %v1218 = vadd.f32 %v609, %v1090
    %v1219 = vadd.f32 %v344, %v1091
    %v1220 = vadd.f32 %v433, %v1092
    %v1221 = vadd.f32 %v522, %v1093
    %v1222 = vadd.f32 %v611, %v1094
    %v1223 = vadd.f32 %v347, %v1095
    %v1224 = vadd.f32 %v436, %v1096
    %v1225 = vadd.f32 %v525, %v1097
    %v1226 = vadd.f32 %v614, %v1098
    %v1227 = vadd.f32 %v349, %v1099
    %v1228 = vadd.f32 %v438, %v1100
    %v1229 = vadd.f32 %v527, %v1101
    %v1230 = vadd.f32 %v616, %v1102
    %v1231 = vadd.f32 %v352, %v1103
    %v1232 = vadd.f32 %v441, %v1104
    %v1233 = vadd.f32 %v530, %v1105
    %v1234 = vadd.f32 %v619, %v1106
    %v1235 = vadd.f32 %v354, %v1107
    %v1236 = vadd.f32 %v443, %v1108
    %v1237 = vadd.f32 %v532, %v1109
    %v1238 = vadd.f32 %v621, %v1110
    %v1239 = vadd.f32 %v357, %v1111
    %v1240 = vadd.f32 %v446, %v1112
    %v1241 = vadd.f32 %v535, %v1113
    %v1242 = vadd.f32 %v624, %v1114
    %v1243 = vadd.f32 %v359, %v1115
    %v1244 = vadd.f32 %v448, %v1116
    %v1245 = vadd.f32 %v537, %v1117
    %v1246 = vadd.f32 %v626, %v1118
    %v1247 = vadd.f32 %v362, %v1119
    %v1248 = vadd.f32 %v451, %v1120
    %v1249 = vadd.f32 %v540, %v1121
    %v1250 = vadd.f32 %v629, %v1122
    %v1251 = vadd.f32 %v364, %v1123
    %v1252 = vadd.f32 %v453, %v1124
    %v1253 = vadd.f32 %v542, %v1125
    %v1254 = vadd.f32 %v631, %v1126
    %v1255 = vadd.f32 %v367, %v1127
    %v1256 = vadd.f32 %v456, %v1128
    %v1257 = vadd.f32 %v545, %v1129
    %v1258 = vadd.f32 %v634, %v1130
    %v1259 = vadd.f32 %v369, %v1131
    %v1260 = vadd.f32 %v458, %v1132
    %v1261 = vadd.f32 %v547, %v1133
    %v1262 = vadd.f32 %v636, %v1134
    %v1263 = vadd.f32 %v372, %v1135
    %v1264 = vadd.f32 %v461, %v1136
    %v1265 = vadd.f32 %v550, %v1137
    %v1266 = vadd.f32 %v639, %v1138
    %v1267 = vadd.f32 %v374, %v1139
    %v1268 = vadd.f32 %v463, %v1140
    %v1269 = vadd.f32 %v552, %v1141
    %v1270 = vadd.f32 %v641, %v1142
    %v1271 = vadd.f32 %v377, %v1143
    %v1272 = vadd.f32 %v466, %v1144
    %v1273 = vadd.f32 %v555, %v1145
    %v1274 = vadd.f32 %v644, %v1146
    %v1275 = vadd.f32 %v379, %v1147
    %v1276 = vadd.f32 %v468, %v1148
    %v1277 = vadd.f32 %v557, %v1149
    %v1278 = vadd.f32 %v646, %v1150
    %v1279 = vadd.f32 %v382, %v1151
    %v1280 = vadd.f32 %v471, %v1152
    %v1281 = vadd.f32 %v560, %v1153
    %v1282 = vadd.f32 %v649, %v1154
    %v1283 = vadd.f32 %v384, %v1155
    %v1284 = vadd.f32 %v473, %v1156
    %v1285 = vadd.f32 %v562, %v1157
    %v1286 = vadd.f32 %v651, %v1158
    %v1287 = vadd.f32 %v387, %v1159
    %v1288 = vadd.f32 %v476, %v1160
    %v1289 = vadd.f32 %v565, %v1161
    %v1290 = vadd.f32 %v654, %v1162
    %v1291 = vadd.f32 %v389, %v1163
    %v1292 = vadd.f32 %v478, %v1164
    %v1293 = vadd.f32 %v567, %v1165
    %v1294 = vadd.f32 %v656, %v1166
    %v1295 = vadd.f32 %v392, %v1167
    %v1296 = vadd.f32 %v481, %v1168
    %v1297 = vadd.f32 %v570, %v1169
    %v1298 = vadd.f32 %v659, %v1170
    %v1299 = vadd.f32 %v394, %v1171
    %v1300 = vadd.f32 %v483, %v1172
    %v1301 = vadd.f32 %v572, %v1173
    %v1302 = vadd.f32 %v661, %v1174
    %v1303 = vmul.f32 %v1175, 0.7978846
    %v1304 = vmul.f32 %v1176, 0.7978846
    %v1305 = vmul.f32 %v1177, 0.7978846
    %v1306 = vmul.f32 %v1178, 0.7978846
    %v1307 = vmul.f32 %v1179, 0.7978846
    %v1308 = vmul.f32 %v1180, 0.7978846
    %v1309 = vmul.f32 %v1181, 0.7978846
    %v1310 = vmul.f32 %v1182, 0.7978846
    %v1311 = vmul.f32 %v1183, 0.7978846
    %v1312 = vmul.f32 %v1184, 0.7978846
    %v1313 = vmul.f32 %v1185, 0.7978846
    %v1314 = vmul.f32 %v1186, 0.7978846
    %v1315 = vmul.f32 %v1187, 0.7978846
    %v1316 = vmul.f32 %v1188, 0.7978846
    %v1317 = vmul.f32 %v1189, 0.7978846
    %v1318 = vmul.f32 %v1190, 0.7978846
    %v1319 = vmul.f32 %v1191, 0.7978846
    %v1320 = vmul.f32 %v1192, 0.7978846
    %v1321 = vmul.f32 %v1193, 0.7978846
    %v1322 = vmul.f32 %v1194, 0.7978846
    %v1323 = vmul.f32 %v1195, 0.7978846
    %v1324 = vmul.f32 %v1196, 0.7978846
    %v1325 = vmul.f32 %v1197, 0.7978846
    %v1326 = vmul.f32 %v1198, 0.7978846
    %v1327 = vmul.f32 %v1199, 0.7978846
    %v1328 = vmul.f32 %v1200, 0.7978846
    %v1329 = vmul.f32 %v1201, 0.7978846
    %v1330 = vmul.f32 %v1202, 0.7978846
    %v1331 = vmul.f32 %v1203, 0.7978846
    %v1332 = vmul.f32 %v1204, 0.7978846
    %v1333 = vmul.f32 %v1205, 0.7978846
    %v1334 = vmul.f32 %v1206, 0.7978846
    %v1335 = vmul.f32 %v1207, 0.7978846
    %v1336 = vmul.f32 %v1208, 0.7978846
    %v1337 = vmul.f32 %v1209, 0.7978846
    %v1338 = vmul.f32 %v1210, 0.7978846
    %v1339 = vmul.f32 %v1211, 0.7978846
    %v1340 = vmul.f32 %v1212, 0.7978846
    %v1341 = vmul.f32 %v1213, 0.7978846
    %v1342 = vmul.f32 %v1214, 0.7978846
    %v1343 = vmul.f32 %v1215, 0.7978846
    %v1344 = vmul.f32 %v1216, 0.7978846
    %v1345 = vmul.f32 %v1217, 0.7978846
    %v1346 = vmul.f32 %v1218, 0.7978846
    %v1347 = vmul.f32 %v1219, 0.7978846
    %v1348 = vmul.f32 %v1220, 0.7978846
    %v1349 = vmul.f32 %v1221, 0.7978846
    %v1350 = vmul.f32 %v1222, 0.7978846
    %v1351 = vmul.f32 %v1223, 0.7978846
    %v1352 = vmul.f32 %v1224, 0.7978846
    %v1353 = vmul.f32 %v1225, 0.7978846
    %v1354 = vmul.f32 %v1226, 0.7978846
    %v1355 = vmul.f32 %v1227, 0.7978846
    %v1356 = vmul.f32 %v1228, 0.7978846
    %v1357 = vmul.f32 %v1229, 0.7978846
    %v1358 = vmul.f32 %v1230, 0.7978846
    %v1359 = vmul.f32 %v1231, 0.7978846
    %v1360 = vmul.f32 %v1232, 0.7978846
    %v1361 = vmul.f32 %v1233, 0.7978846
    %v1362 = vmul.f32 %v1234, 0.7978846
    %v1363 = vmul.f32 %v1235, 0.7978846
    %v1364 = vmul.f32 %v1236, 0.7978846
    %v1365 = vmul.f32 %v1237, 0.7978846
    %v1366 = vmul.f32 %v1238, 0.7978846
    %v1367 = vmul.f32 %v1239, 0.7978846
    %v1368 = vmul.f32 %v1240, 0.7978846
    %v1369 = vmul.f32 %v1241, 0.7978846
    %v1370 = vmul.f32 %v1242, 0.7978846
    %v1371 = vmul.f32 %v1243, 0.7978846
    %v1372 = vmul.f32 %v1244, 0.7978846
    %v1373 = vmul.f32 %v1245, 0.7978846
    %v1374 = vmul.f32 %v1246, 0.7978846
    %v1375 = vmul.f32 %v1247, 0.7978846
    %v1376 = vmul.f32 %v1248, 0.7978846
    %v1377 = vmul.f32 %v1249, 0.7978846
    %v1378 = vmul.f32 %v1250, 0.7978846
    %v1379 = vmul.f32 %v1251, 0.7978846
    %v1380 = vmul.f32 %v1252, 0.7978846
    %v1381 = vmul.f32 %v1253, 0.7978846
    %v1382 = vmul.f32 %v1254, 0.7978846
    %v1383 = vmul.f32 %v1255, 0.7978846
    %v1384 = vmul.f32 %v1256, 0.7978846
    %v1385 = vmul.f32 %v1257, 0.7978846
    %v1386 = vmul.f32 %v1258, 0.7978846
    %v1387 = vmul.f32 %v1259, 0.7978846
    %v1388 = vmul.f32 %v1260, 0.7978846
    %v1389 = vmul.f32 %v1261, 0.7978846
    %v1390 = vmul.f32 %v1262, 0.7978846
    %v1391 = vmul.f32 %v1263, 0.7978846
    %v1392 = vmul.f32 %v1264, 0.7978846
    %v1393 = vmul.f32 %v1265, 0.7978846
    %v1394 = vmul.f32 %v1266, 0.7978846
    %v1395 = vmul.f32 %v1267, 0.7978846
    %v1396 = vmul.f32 %v1268, 0.7978846
    %v1397 = vmul.f32 %v1269, 0.7978846
    %v1398 = vmul.f32 %v1270, 0.7978846
    %v1399 = vmul.f32 %v1271, 0.7978846
    %v1400 = vmul.f32 %v1272, 0.7978846
    %v1401 = vmul.f32 %v1273, 0.7978846
    %v1402 = vmul.f32 %v1274, 0.7978846
    %v1403 = vmul.f32 %v1275, 0.7978846
    %v1404 = vmul.f32 %v1276, 0.7978846
    %v1405 = vmul.f32 %v1277, 0.7978846
    %v1406 = vmul.f32 %v1278, 0.7978846
    %v1407 = vmul.f32 %v1279, 0.7978846
    %v1408 = vmul.f32 %v1280, 0.7978846
    %v1409 = vmul.f32 %v1281, 0.7978846
    %v1410 = vmul.f32 %v1282, 0.7978846
    %v1411 = vmul.f32 %v1283, 0.7978846
    %v1412 = vmul.f32 %v1284, 0.7978846
    %v1413 = vmul.f32 %v1285, 0.7978846
    %v1414 = vmul.f32 %v1286, 0.7978846
    %v1415 = vmul.f32 %v1287, 0.7978846
    %v1416 = vmul.f32 %v1288, 0.7978846
    %v1417 = vmul.f32 %v1289, 0.7978846
    %v1418 = vmul.f32 %v1290, 0.7978846
    %v1419 = vmul.f32 %v1291, 0.7978846
    %v1420 = vmul.f32 %v1292, 0.7978846
    %v1421 = vmul.f32 %v1293, 0.7978846
    %v1422 = vmul.f32 %v1294, 0.7978846
    %v1423 = vmul.f32 %v1295, 0.7978846
    %v1424 = vmul.f32 %v1296, 0.7978846
    %v1425 = vmul.f32 %v1297, 0.7978846
    %v1426 = vmul.f32 %v1298, 0.7978846
    %v1427 = vmul.f32 %v1299, 0.7978846
    %v1428 = vmul.f32 %v1300, 0.7978846
    %v1429 = vmul.f32 %v1301, 0.7978846
    %v1430 = vmul.f32 %v1302, 0.7978846
    %v1431 = vtanh.pop %v1303
    %v1432 = vtanh.pop %v1304
    %v1433 = vtanh.pop %v1305
    %v1434 = vtanh.pop %v1306
    %v1435 = vtanh.pop %v1307
    %v1436 = vtanh.pop %v1308
    %v1437 = vtanh.pop %v1309
    %v1438 = vtanh.pop %v1310
    %v1439 = vtanh.pop %v1311
    %v1440 = vtanh.pop %v1312
    %v1441 = vtanh.pop %v1313
    %v1442 = vtanh.pop %v1314
    %v1443 = vtanh.pop %v1315
    %v1444 = vtanh.pop %v1316
    %v1445 = vtanh.pop %v1317
    %v1446 = vtanh.pop %v1318
    %v1447 = vtanh.pop %v1319
    %v1448 = vtanh.pop %v1320
    %v1449 = vtanh.pop %v1321
    %v1450 = vtanh.pop %v1322
    %v1451 = vtanh.pop %v1323
    %v1452 = vtanh.pop %v1324
    %v1453 = vtanh.pop %v1325
    %v1454 = vtanh.pop %v1326
    %v1455 = vtanh.pop %v1327
    %v1456 = vtanh.pop %v1328
    %v1457 = vtanh.pop %v1329
    %v1458 = vtanh.pop %v1330
    %v1459 = vtanh.pop %v1331
    %v1460 = vtanh.pop %v1332
    %v1461 = vtanh.pop %v1333
    %v1462 = vtanh.pop %v1334
    %v1463 = vtanh.pop %v1335
    %v1464 = vtanh.pop %v1336
    %v1465 = vtanh.pop %v1337
    %v1466 = vtanh.pop %v1338
    %v1467 = vtanh.pop %v1339
    %v1468 = vtanh.pop %v1340
    %v1469 = vtanh.pop %v1341
    %v1470 = vtanh.pop %v1342
    %v1471 = vtanh.pop %v1343
    %v1472 = vtanh.pop %v1344
    %v1473 = vtanh.pop %v1345
    %v1474 = vtanh.pop %v1346
    %v1475 = vtanh.pop %v1347
    %v1476 = vtanh.pop %v1348
    %v1477 = vtanh.pop %v1349
    %v1478 = vtanh.pop %v1350
    %v1479 = vtanh.pop %v1351
    %v1480 = vtanh.pop %v1352
    %v1481 = vtanh.pop %v1353
    %v1482 = vtanh.pop %v1354
    %v1483 = vtanh.pop %v1355
    %v1484 = vtanh.pop %v1356
    %v1485 = vtanh.pop %v1357
    %v1486 = vtanh.pop %v1358
    %v1487 = vtanh.pop %v1359
    %v1488 = vtanh.pop %v1360
    %v1489 = vtanh.pop %v1361
    %v1490 = vtanh.pop %v1362
    %v1491 = vtanh.pop %v1363
    %v1492 = vtanh.pop %v1364
    %v1493 = vtanh.pop %v1365
    %v1494 = vtanh.pop %v1366
    %v1495 = vtanh.pop %v1367
    %v1496 = vtanh.pop %v1368
    %v1497 = vtanh.pop %v1369
    %v1498 = vtanh.pop %v1370
    %v1499 = vtanh.pop %v1371
    %v1500 = vtanh.pop %v1372
    %v1501 = vtanh.pop %v1373
    %v1502 = vtanh.pop %v1374
    %v1503 = vtanh.pop %v1375
    %v1504 = vtanh.pop %v1376
    %v1505 = vtanh.pop %v1377
    %v1506 = vtanh.pop %v1378
    %v1507 = vtanh.pop %v1379
    %v1508 = vtanh.pop %v1380
    %v1509 = vtanh.pop %v1381
    %v1510 = vtanh.pop %v1382
    %v1511 = vtanh.pop %v1383
    %v1512 = vtanh.pop %v1384
    %v1513 = vtanh.pop %v1385
    %v1514 = vtanh.pop %v1386
    %v1515 = vtanh.pop %v1387
    %v1516 = vtanh.pop %v1388
    %v1517 = vtanh.pop %v1389
    %v1518 = vtanh.pop %v1390
    %v1519 = vtanh.pop %v1391
    %v1520 = vtanh.pop %v1392
    %v1521 = vtanh.pop %v1393
    %v1522 = vtanh.pop %v1394
    %v1523 = vtanh.pop %v1395
    %v1524 = vtanh.pop %v1396
    %v1525 = vtanh.pop %v1397
    %v1526 = vtanh.pop %v1398
    %v1527 = vtanh.pop %v1399
    %v1528 = vtanh.pop %v1400
    %v1529 = vtanh.pop %v1401
    %v1530 = vtanh.pop %v1402
    %v1531 = vtanh.pop %v1403
    %v1532 = vtanh.pop %v1404
    %v1533 = vtanh.pop %v1405
    %v1534 = vtanh.pop %v1406
    %v1535 = vtanh.pop %v1407
    %v1536 = vtanh.pop %v1408
    %v1537 = vtanh.pop %v1409
    %v1538 = vtanh.pop %v1410
    %v1539 = vtanh.pop %v1411
    %v1540 = vtanh.pop %v1412
    %v1541 = vtanh.pop %v1413
    %v1542 = vtanh.pop %v1414
    %v1543 = vtanh.pop %v1415
    %v1544 = vtanh.pop %v1416
    %v1545 = vtanh.pop %v1417
    %v1546 = vtanh.pop %v1418
    %v1547 = vtanh.pop %v1419
    %v1548 = vtanh.pop %v1420
    %v1549 = vtanh.pop %v1421
    %v1550 = vtanh.pop %v1422
    %v1551 = vtanh.pop %v1423
    %v1552 = vtanh.pop %v1424
    %v1553 = vtanh.pop %v1425
    %v1554 = vtanh.pop %v1426
    %v1555 = vtanh.pop %v1427
    %v1556 = vtanh.pop %v1428
    %v1557 = vtanh.pop %v1429
    %v1558 = vtanh.pop %v1430
    %v1559 = vadd.f32 %v1431, 1.0
    %v1560 = vadd.f32 %v1432, 1.0
    %v1561 = vadd.f32 %v1433, 1.0
    %v1562 = vadd.f32 %v1434, 1.0
    %v1563 = vadd.f32 %v1435, 1.0
    %v1564 = vadd.f32 %v1436, 1.0
    %v1565 = vadd.f32 %v1437, 1.0
    %v1566 = vadd.f32 %v1438, 1.0
    %v1567 = vadd.f32 %v1439, 1.0
    %v1568 = vadd.f32 %v1440, 1.0
    %v1569 = vadd.f32 %v1441, 1.0
    %v1570 = vadd.f32 %v1442, 1.0
    %v1571 = vadd.f32 %v1443, 1.0
    %v1572 = vadd.f32 %v1444, 1.0
    %v1573 = vadd.f32 %v1445, 1.0
    %v1574 = vadd.f32 %v1446, 1.0
    %v1575 = vadd.f32 %v1447, 1.0
    %v1576 = vadd.f32 %v1448, 1.0
    %v1577 = vadd.f32 %v1449, 1.0
    %v1578 = vadd.f32 %v1450, 1.0
    %v1579 = vadd.f32 %v1451, 1.0
    %v1580 = vadd.f32 %v1452, 1.0
    %v1581 = vadd.f32 %v1453, 1.0
    %v1582 = vadd.f32 %v1454, 1.0
    %v1583 = vadd.f32 %v1455, 1.0
    %v1584 = vadd.f32 %v1456, 1.0
    %v1585 = vadd.f32 %v1457, 1.0
    %v1586 = vadd.f32 %v1458, 1.0
    %v1587 = vadd.f32 %v1459, 1.0
    %v1588 = vadd.f32 %v1460, 1.0
    %v1589 = vadd.f32 %v1461, 1.0
    %v1590 = vadd.f32 %v1462, 1.0
    %v1591 = vadd.f32 %v1463, 1.0
    %v1592 = vadd.f32 %v1464, 1.0
    %v1593 = vadd.f32 %v1465, 1.0
    %v1594 = vadd.f32 %v1466, 1.0
    %v1595 = vadd.f32 %v1467, 1.0
    %v1596 = vadd.f32 %v1468, 1.0
    %v1597 = vadd.f32 %v1469, 1.0
    %v1598 = vadd.f32 %v1470, 1.0
    %v1599 = vadd.f32 %v1471, 1.0
    %v1600 = vadd.f32 %v1472, 1.0
    %v1601 = vadd.f32 %v1473, 1.0
    %v1602 = vadd.f32 %v1474, 1.0
    %v1603 = vadd.f32 %v1475, 1.0
    %v1604 = vadd.f32 %v1476, 1.0
    %v1605 = vadd.f32 %v1477, 1.0
    %v1606 = vadd.f32 %v1478, 1.0
    %v1607 = vadd.f32 %v1479, 1.0
    %v1608 = vadd.f32 %v1480, 1.0
    %v1609 = vadd.f32 %v1481, 1.0
    %v1610 = vadd.f32 %v1482, 1.0
    %v1611 = vadd.f32 %v1483, 1.0
    %v1612 = vadd.f32 %v1484, 1.0
    %v1613 = vadd.f32 %v1485, 1.0
    %v1614 = vadd.f32 %v1486, 1.0
    %v1615 = vadd.f32 %v1487, 1.0
    %v1616 = vadd.f32 %v1488, 1.0
    %v1617 = vadd.f32 %v1489, 1.0
    %v1618 = vadd.f32 %v1490, 1.0
    %v1619 = vadd.f32 %v1491, 1.0
    %v1620 = vadd.f32 %v1492, 1.0
    %v1621 = vadd.f32 %v1493, 1.0
    %v1622 = vadd.f32 %v1494, 1.0
    %v1623 = vadd.f32 %v1495, 1.0
    %v1624 = vadd.f32 %v1496, 1.0
    %v1625 = vadd.f32 %v1497, 1.0
    %v1626 = vadd.f32 %v1498, 1.0
    %v1627 = vadd.f32 %v1499, 1.0
    %v1628 = vadd.f32 %v1500, 1.0
    %v1629 = vadd.f32 %v1501, 1.0
    %v1630 = vadd.f32 %v1502, 1.0
    %v1631 = vadd.f32 %v1503, 1.0
    %v1632 = vadd.f32 %v1504, 1.0
    %v1633 = vadd.f32 %v1505, 1.0
    %v1634 = vadd.f32 %v1506, 1.0
    %v1635 = vadd.f32 %v1507, 1.0
    %v1636 = vadd.f32 %v1508, 1.0
    %v1637 = vadd.f32 %v1509, 1.0
    %v1638 = vadd.f32 %v1510, 1.0
    %v1639 = vadd.f32 %v1511, 1.0
    %v1640 = vadd.f32 %v1512, 1.0
    %v1641 = vadd.f32 %v1513, 1.0
    %v1642 = vadd.f32 %v1514, 1.0
    %v1643 = vadd.f32 %v1515, 1.0
    %v1644 = vadd.f32 %v1516, 1.0
    %v1645 = vadd.f32 %v1517, 1.0
    %v1646 = vadd.f32 %v1518, 1.0
    %v1647 = vadd.f32 %v1519, 1.0
    %v1648 = vadd.f32 %v1520, 1.0
    %v1649 = vadd.f32 %v1521, 1.0
    %v1650 = vadd.f32 %v1522, 1.0
    %v1651 = vadd.f32 %v1523, 1.0
    %v1652 = vadd.f32 %v1524, 1.0
    %v1653 = vadd.f32 %v1525, 1.0
    %v1654 = vadd.f32 %v1526, 1.0
    %v1655 = vadd.f32 %v1527, 1.0
    %v1656 = vadd.f32 %v1528, 1.0
    %v1657 = vadd.f32 %v1529, 1.0
    %v1658 = vadd.f32 %v1530, 1.0
    %v1659 = vadd.f32 %v1531, 1.0
    %v1660 = vadd.f32 %v1532, 1.0
    %v1661 = vadd.f32 %v1533, 1.0
    %v1662 = vadd.f32 %v1534, 1.0
    %v1663 = vadd.f32 %v1535, 1.0
    %v1664 = vadd.f32 %v1536, 1.0
    %v1665 = vadd.f32 %v1537, 1.0
    %v1666 = vadd.f32 %v1538, 1.0
    %v1667 = vadd.f32 %v1539, 1.0
    %v1668 = vadd.f32 %v1540, 1.0
    %v1669 = vadd.f32 %v1541, 1.0
    %v1670 = vadd.f32 %v1542, 1.0
    %v1671 = vadd.f32 %v1543, 1.0
    %v1672 = vadd.f32 %v1544, 1.0
    %v1673 = vadd.f32 %v1545, 1.0
    %v1674 = vadd.f32 %v1546, 1.0
    %v1675 = vadd.f32 %v1547, 1.0
    %v1676 = vadd.f32 %v1548, 1.0
    %v1677 = vadd.f32 %v1549, 1.0
    %v1678 = vadd.f32 %v1550, 1.0
    %v1679 = vadd.f32 %v1551, 1.0
    %v1680 = vadd.f32 %v1552, 1.0
    %v1681 = vadd.f32 %v1553, 1.0
    %v1682 = vadd.f32 %v1554, 1.0
    %v1683 = vadd.f32 %v1555, 1.0
    %v1684 = vadd.f32 %v1556, 1.0
    %v1685 = vadd.f32 %v1557, 1.0
    %v1686 = vadd.f32 %v1558, 1.0
    %v1687 = vmul.f32 %v919, %v1559
    %v1688 = vmul.f32 %v920, %v1560
    %v1689 = vmul.f32 %v921, %v1561
    %v1690 = vmul.f32 %v922, %v1562
    %v1691 = vmul.f32 %v923, %v1563
    %v1692 = vmul.f32 %v924, %v1564
    %v1693 = vmul.f32 %v925, %v1565
    %v1694 = vmul.f32 %v926, %v1566
    %v1695 = vmul.f32 %v927, %v1567
    %v1696 = vmul.f32 %v928, %v1568
    %v1697 = vmul.f32 %v929, %v1569
    %v1698 = vmul.f32 %v930, %v1570
    %v1699 = vmul.f32 %v931, %v1571
    %v1700 = vmul.f32 %v932, %v1572
    %v1701 = vmul.f32 %v933, %v1573
    %v1702 = vmul.f32 %v934, %v1574
    %v1703 = vmul.f32 %v935, %v1575
    %v1704 = vmul.f32 %v936, %v1576
    %v1705 = vmul.f32 %v937, %v1577
    %v1706 = vmul.f32 %v938, %v1578
    %v1707 = vmul.f32 %v939, %v1579
    %v1708 = vmul.f32 %v940, %v1580
    %v1709 = vmul.f32 %v941, %v1581
    %v1710 = vmul.f32 %v942, %v1582
    %v1711 = vmul.f32 %v943, %v1583
    %v1712 = vmul.f32 %v944, %v1584
    %v1713 = vmul.f32 %v945, %v1585
    %v1714 = vmul.f32 %v946, %v1586
    %v1715 = vmul.f32 %v947, %v1587
    %v1716 = vmul.f32 %v948, %v1588
    %v1717 = vmul.f32 %v949, %v1589
    %v1718 = vmul.f32 %v950, %v1590
    %v1719 = vmul.f32 %v951, %v1591
    %v1720 = vmul.f32 %v952, %v1592
    %v1721 = vmul.f32 %v953, %v1593
    %v1722 = vmul.f32 %v954, %v1594
    %v1723 = vmul.f32 %v955, %v1595
    %v1724 = vmul.f32 %v956, %v1596
    %v1725 = vmul.f32 %v957, %v1597
    %v1726 = vmul.f32 %v958, %v1598
    %v1727 = vmul.f32 %v959, %v1599
    %v1728 = vmul.f32 %v960, %v1600
    %v1729 = vmul.f32 %v961, %v1601
    %v1730 = vmul.f32 %v962, %v1602
    %v1731 = vmul.f32 %v963, %v1603
    %v1732 = vmul.f32 %v964, %v1604
    %v1733 = vmul.f32 %v965, %v1605
    %v1734 = vmul.f32 %v966, %v1606
    %v1735 = vmul.f32 %v967, %v1607
    %v1736 = vmul.f32 %v968, %v1608
    %v1737 = vmul.f32 %v969, %v1609
    %v1738 = vmul.f32 %v970, %v1610
    %v1739 = vmul.f32 %v971, %v1611
    %v1740 = vmul.f32 %v972, %v1612
    %v1741 = vmul.f32 %v973, %v1613
    %v1742 = vmul.f32 %v974, %v1614
    %v1743 = vmul.f32 %v975, %v1615
    %v1744 = vmul.f32 %v976, %v1616
    %v1745 = vmul.f32 %v977, %v1617
    %v1746 = vmul.f32 %v978, %v1618
    %v1747 = vmul.f32 %v979, %v1619
    %v1748 = vmul.f32 %v980, %v1620
    %v1749 = vmul.f32 %v981, %v1621
    %v1750 = vmul.f32 %v982, %v1622
    %v1751 = vmul.f32 %v983, %v1623
    %v1752 = vmul.f32 %v984, %v1624
    %v1753 = vmul.f32 %v985, %v1625
    %v1754 = vmul.f32 %v986, %v1626
    %v1755 = vmul.f32 %v987, %v1627
    %v1756 = vmul.f32 %v988, %v1628
    %v1757 = vmul.f32 %v989, %v1629
    %v1758 = vmul.f32 %v990, %v1630
    %v1759 = vmul.f32 %v991, %v1631
    %v1760 = vmul.f32 %v992, %v1632
    %v1761 = vmul.f32 %v993, %v1633
    %v1762 = vmul.f32 %v994, %v1634
    %v1763 = vmul.f32 %v995, %v1635
    %v1764 = vmul.f32 %v996, %v1636
    %v1765 = vmul.f32 %v997, %v1637
    %v1766 = vmul.f32 %v998, %v1638
    %v1767 = vmul.f32 %v999, %v1639
    %v1768 = vmul.f32 %v1000, %v1640
    %v1769 = vmul.f32 %v1001, %v1641
    %v1770 = vmul.f32 %v1002, %v1642
    %v1771 = vmul.f32 %v1003, %v1643
    %v1772 = vmul.f32 %v1004, %v1644
    %v1773 = vmul.f32 %v1005, %v1645
    %v1774 = vmul.f32 %v1006, %v1646
    %v1775 = vmul.f32 %v1007, %v1647
    %v1776 = vmul.f32 %v1008, %v1648
    %v1777 = vmul.f32 %v1009, %v1649
    %v1778 = vmul.f32 %v1010, %v1650
    %v1779 = vmul.f32 %v1011, %v1651
    %v1780 = vmul.f32 %v1012, %v1652
    %v1781 = vmul.f32 %v1013, %v1653
    %v1782 = vmul.f32 %v1014, %v1654
    %v1783 = vmul.f32 %v1015, %v1655
    %v1784 = vmul.f32 %v1016, %v1656
    %v1785 = vmul.f32 %v1017, %v1657
    %v1786 = vmul.f32 %v1018, %v1658
    %v1787 = vmul.f32 %v1019, %v1659
    %v1788 = vmul.f32 %v1020, %v1660
    %v1789 = vmul.f32 %v1021, %v1661
    %v1790 = vmul.f32 %v1022, %v1662
    %v1791 = vmul.f32 %v1023, %v1663
    %v1792 = vmul.f32 %v1024, %v1664
    %v1793 = vmul.f32 %v1025, %v1665
    %v1794 = vmul.f32 %v1026, %v1666
    %v1795 = vmul.f32 %v1027, %v1667
    %v1796 = vmul.f32 %v1028, %v1668
    %v1797 = vmul.f32 %v1029, %v1669
    %v1798 = vmul.f32 %v1030, %v1670
    %v1799 = vmul.f32 %v1031, %v1671
    %v1800 = vmul.f32 %v1032, %v1672
    %v1801 = vmul.f32 %v1033, %v1673
    %v1802 = vmul.f32 %v1034, %v1674
    %v1803 = vmul.f32 %v1035, %v1675
    %v1804 = vmul.f32 %v1036, %v1676
    %v1805 = vmul.f32 %v1037, %v1677
    %v1806 = vmul.f32 %v1038, %v1678
    %v1807 = vmul.f32 %v1039, %v1679
    %v1808 = vmul.f32 %v1040, %v1680
    %v1809 = vmul.f32 %v1041, %v1681
    %v1810 = vmul.f32 %v1042, %v1682
    %v1811 = vmul.f32 %v1043, %v1683
    %v1812 = vmul.f32 %v1044, %v1684
    %v1813 = vmul.f32 %v1045, %v1685
    %v1814 = vmul.f32 %v1046, %v1686
    %v1815 = vld [vmem:[#allocation2] sm:$0xff]
    %v1816 = vld [vmem:[#allocation2 + $0x8] sm:$0xff]
    %v1817 = vld [vmem:[#allocation2 + $0x10] sm:$0xff]
    %v1818 = vld [vmem:[#allocation2 + $0x18] sm:$0xff]
    %v1819 = vld [vmem:[#allocation2 + $0x20] sm:$0xff]
    %v1820 = vld [vmem:[#allocation2 + $0x28] sm:$0xff]
    %v1821 = vld [vmem:[#allocation2 + $0x30] sm:$0xff]
    %v1822 = vld [vmem:[#allocation2 + $0x38] sm:$0xff]
    %v1823 = vld [vmem:[#allocation2 + $0x40] sm:$0xff]
    %v1824 = vld [vmem:[#allocation2 + $0x48] sm:$0xff]
    %v1825 = vld [vmem:[#allocation2 + $0x50] sm:$0xff]
    %v1826 = vld [vmem:[#allocation2 + $0x58] sm:$0xff]
    %v1827 = vld [vmem:[#allocation2 + $0x60] sm:$0xff]
    %v1828 = vld [vmem:[#allocation2 + $0x68] sm:$0xff]
    %v1829 = vld [vmem:[#allocation2 + $0x70] sm:$0xff]
    %v1830 = vld [vmem:[#allocation2 + $0x78] sm:$0xff]
    %v1831 = vld [vmem:[#allocation2 + $0x80] sm:$0xff]
    %v1832 = vld [vmem:[#allocation2 + $0x88] sm:$0xff]
    %v1833 = vld [vmem:[#allocation2 + $0x90] sm:$0xff]
    %v1834 = vld [vmem:[#allocation2 + $0x98] sm:$0xff]
    %v1835 = vld [vmem:[#allocation2 + $0xa0] sm:$0xff]
    %v1836 = vld [vmem:[#allocation2 + $0xa8] sm:$0xff]
    %v1837 = vld [vmem:[#allocation2 + $0xb0] sm:$0xff]
    %v1838 = vld [vmem:[#allocation2 + $0xb8] sm:$0xff]
    %v1839 = vld [vmem:[#allocation2 + $0xc0] sm:$0xff]
    %v1840 = vld [vmem:[#allocation2 + $0xc8] sm:$0xff]
    %v1841 = vld [vmem:[#allocation2 + $0xd0] sm:$0xff]
    %v1842 = vld [vmem:[#allocation2 + $0xd8] sm:$0xff]
    %v1843 = vld [vmem:[#allocation2 + $0xe0] sm:$0xff]
    %v1844 = vld [vmem:[#allocation2 + $0xe8] sm:$0xff]
    %v1845 = vld [vmem:[#allocation2 + $0xf0] sm:$0xff]
    %v1846 = vld [vmem:[#allocation2 + $0xf8] sm:$0xff]
    %v1847 = vpack.c.bf16 %v1691, %v1687
    %v1848 = vpack.c.bf16 %v1692, %v1688
    %v1849 = vpack.c.bf16 %v1693, %v1689
    %v1850 = vpack.c.bf16 %v1694, %v1690
    %v1851 = vpack.c.bf16 %v1699, %v1695
    %v1852 = vpack.c.bf16 %v1700, %v1696
    %v1853 = vpack.c.bf16 %v1701, %v1697
    %v1854 = vpack.c.bf16 %v1702, %v1698
    %v1855 = vpack.c.bf16 %v1707, %v1703
    %v1856 = vpack.c.bf16 %v1708, %v1704
    %v1857 = vpack.c.bf16 %v1709, %v1705
    %v1858 = vpack.c.bf16 %v1710, %v1706
    %v1859 = vpack.c.bf16 %v1715, %v1711
    %v1860 = vpack.c.bf16 %v1716, %v1712
    %v1861 = vpack.c.bf16 %v1717, %v1713
    %v1862 = vpack.c.bf16 %v1718, %v1714
    %v1863 = vpack.c.bf16 %v1723, %v1719
    %v1864 = vpack.c.bf16 %v1724, %v1720
    %v1865 = vpack.c.bf16 %v1725, %v1721
    %v1866 = vpack.c.bf16 %v1726, %v1722
    %v1867 = vpack.c.bf16 %v1731, %v1727
    %v1868 = vpack.c.bf16 %v1732, %v1728
    %v1869 = vpack.c.bf16 %v1733, %v1729
    %v1870 = vpack.c.bf16 %v1734, %v1730
    %v1871 = vpack.c.bf16 %v1739, %v1735
    %v1872 = vpack.c.bf16 %v1740, %v1736
    %v1873 = vpack.c.bf16 %v1741, %v1737
    %v1874 = vpack.c.bf16 %v1742, %v1738
    %v1875 = vpack.c.bf16 %v1747, %v1743
    %v1876 = vpack.c.bf16 %v1748, %v1744
    %v1877 = vpack.c.bf16 %v1749, %v1745
    %v1878 = vpack.c.bf16 %v1750, %v1746
    %v1879 = vpack.c.bf16 %v1755, %v1751
    %v1880 = vpack.c.bf16 %v1756, %v1752
    %v1881 = vpack.c.bf16 %v1757, %v1753
    %v1882 = vpack.c.bf16 %v1758, %v1754
    %v1883 = vpack.c.bf16 %v1763, %v1759
    %v1884 = vpack.c.bf16 %v1764, %v1760
    %v1885 = vpack.c.bf16 %v1765, %v1761
    %v1886 = vpack.c.bf16 %v1766, %v1762
    %v1887 = vpack.c.bf16 %v1771, %v1767
    %v1888 = vpack.c.bf16 %v1772, %v1768
    %v1889 = vpack.c.bf16 %v1773, %v1769
    %v1890 = vpack.c.bf16 %v1774, %v1770
    %v1891 = vpack.c.bf16 %v1779, %v1775
    %v1892 = vpack.c.bf16 %v1780, %v1776
    %v1893 = vpack.c.bf16 %v1781, %v1777
    %v1894 = vpack.c.bf16 %v1782, %v1778
    %v1895 = vpack.c.bf16 %v1787, %v1783
    %v1896 = vpack.c.bf16 %v1788, %v1784
    %v1897 = vpack.c.bf16 %v1789, %v1785
    %v1898 = vpack.c.bf16 %v1790, %v1786
    %v1899 = vpack.c.bf16 %v1795, %v1791
    %v1900 = vpack.c.bf16 %v1796, %v1792
    %v1901 = vpack.c.bf16 %v1797, %v1793
    %v1902 = vpack.c.bf16 %v1798, %v1794
    %v1903 = vpack.c.bf16 %v1803, %v1799
    %v1904 = vpack.c.bf16 %v1804, %v1800
    %v1905 = vpack.c.bf16 %v1805, %v1801
    %v1906 = vpack.c.bf16 %v1806, %v1802
    %v1907 = vpack.c.bf16 %v1811, %v1807
    %v1908 = vpack.c.bf16 %v1812, %v1808
    %v1909 = vpack.c.bf16 %v1813, %v1809
    %v1910 = vpack.c.bf16 %v1814, %v1810
    %v1911 = vld [vmem:[%s3] sm:$0xf]
    %v1912 = vld [vmem:[%s3 + $0x4] sm:$0xf]
    %v1913 = vld [vmem:[%s3 + $0x8] sm:$0xf]
    %v1914 = vld [vmem:[%s3 + $0xc] sm:$0xf]
    %v1915 = vld [vmem:[%s3 + $0x10] sm:$0xf]
    %v1916 = vld [vmem:[%s3 + $0x14] sm:$0xf]
    %v1917 = vld [vmem:[%s3 + $0x18] sm:$0xf]
    %v1918 = vld [vmem:[%s3 + $0x1c] sm:$0xf]
    %v1919 = vld [vmem:[%s3 + $0x20] sm:$0xf]
    %v1920 = vld [vmem:[%s3 + $0x24] sm:$0xf]
    %v1921 = vld [vmem:[%s3 + $0x28] sm:$0xf]
    %v1922 = vld [vmem:[%s3 + $0x2c] sm:$0xf]
    %v1923 = vld [vmem:[%s3 + $0x30] sm:$0xf]
    %v1924 = vld [vmem:[%s3 + $0x34] sm:$0xf]
    %v1925 = vld [vmem:[%s3 + $0x38] sm:$0xf]
    %v1926 = vld [vmem:[%s3 + $0x3c] sm:$0xf]
    %v1927 = vld [vmem:[%s3 + $0x40] sm:$0xf]
    %v1928 = vld [vmem:[%s3 + $0x44] sm:$0xf]
    %v1929 = vld [vmem:[%s3 + $0x48] sm:$0xf]
    %v1930 = vld [vmem:[%s3 + $0x4c] sm:$0xf]
    %v1931 = vld [vmem:[%s3 + $0x50] sm:$0xf]
    %v1932 = vld [vmem:[%s3 + $0x54] sm:$0xf]
    %v1933 = vld [vmem:[%s3 + $0x58] sm:$0xf]
    %v1934 = vld [vmem:[%s3 + $0x5c] sm:$0xf]
    %v1935 = vld [vmem:[%s3 + $0x60] sm:$0xf]
    %v1936 = vld [vmem:[%s3 + $0x64] sm:$0xf]
    %v1937 = vld [vmem:[%s3 + $0x68] sm:$0xf]
    %v1938 = vld [vmem:[%s3 + $0x6c] sm:$0xf]
    %v1939 = vld [vmem:[%s3 + $0x70] sm:$0xf]
    %v1940 = vld [vmem:[%s3 + $0x74] sm:$0xf]
    %v1941 = vld [vmem:[%s3 + $0x78] sm:$0xf]
    %v1942 = vld [vmem:[%s3 + $0x7c] sm:$0xf]
    %v1943 = vld [vmem:[%s3 + $0x80] sm:$0xf]
    %v1944 = vld [vmem:[%s3 + $0x84] sm:$0xf]
    %v1945 = vld [vmem:[%s3 + $0x88] sm:$0xf]
    %v1946 = vld [vmem:[%s3 + $0x8c] sm:$0xf]
    %v1947 = vld [vmem:[%s3 + $0x90] sm:$0xf]
    %v1948 = vld [vmem:[%s3 + $0x94] sm:$0xf]
    %v1949 = vld [vmem:[%s3 + $0x98] sm:$0xf]
    %v1950 = vld [vmem:[%s3 + $0x9c] sm:$0xf]
    %v1951 = vld [vmem:[%s3 + $0xa0] sm:$0xf]
    %v1952 = vld [vmem:[%s3 + $0xa4] sm:$0xf]
    %v1953 = vld [vmem:[%s3 + $0xa8] sm:$0xf]
    %v1954 = vld [vmem:[%s3 + $0xac] sm:$0xf]
    %v1955 = vld [vmem:[%s3 + $0xb0] sm:$0xf]
    %v1956 = vld [vmem:[%s3 + $0xb4] sm:$0xf]
    %v1957 = vld [vmem:[%s3 + $0xb8] sm:$0xf]
    %v1958 = vld [vmem:[%s3 + $0xbc] sm:$0xf]
    %v1959 = vld [vmem:[%s3 + $0xc0] sm:$0xf]
    %v1960 = vld [vmem:[%s3 + $0xc4] sm:$0xf]
    %v1961 = vld [vmem:[%s3 + $0xc8] sm:$0xf]
    %v1962 = vld [vmem:[%s3 + $0xcc] sm:$0xf]
    %v1963 = vld [vmem:[%s3 + $0xd0] sm:$0xf]
    %v1964 = vld [vmem:[%s3 + $0xd4] sm:$0xf]
    %v1965 = vld [vmem:[%s3 + $0xd8] sm:$0xf]
    %v1966 = vld [vmem:[%s3 + $0xdc] sm:$0xf]
    %v1967 = vld [vmem:[%s3 + $0xe0] sm:$0xf]
    %v1968 = vld [vmem:[%s3 + $0xe4] sm:$0xf]
    %v1969 = vld [vmem:[%s3 + $0xe8] sm:$0xf]
    %v1970 = vld [vmem:[%s3 + $0xec] sm:$0xf]
    %v1971 = vld [vmem:[%s3 + $0xf0] sm:$0xf]
    %v1972 = vld [vmem:[%s3 + $0xf4] sm:$0xf]
    %v1973 = vld [vmem:[%s3 + $0xf8] sm:$0xf]
    %v1974 = vld [vmem:[%s3 + $0xfc] sm:$0xf]
    %v2039 = vunpack.c.l.b16 %v1911
    %v2040 = vunpack.c.l.b16 %v1912
    %v2041 = vunpack.c.l.b16 %v1913
    %v2042 = vunpack.c.l.b16 %v1914
    %v2043 = vunpack.c.l.b16 %v1915
    %v2044 = vunpack.c.l.b16 %v1916
    %v2045 = vunpack.c.l.b16 %v1917
    %v2046 = vunpack.c.l.b16 %v1918
    %v2047 = vunpack.c.l.b16 %v1919
    %v2048 = vunpack.c.l.b16 %v1920
    %v2049 = vunpack.c.l.b16 %v1921
    %v2050 = vunpack.c.l.b16 %v1922
    %v2051 = vunpack.c.l.b16 %v1923
    %v2052 = vunpack.c.l.b16 %v1924
    %v2053 = vunpack.c.l.b16 %v1925
    %v2054 = vunpack.c.l.b16 %v1926
    %v2055 = vunpack.c.l.b16 %v1927
    %v2056 = vunpack.c.l.b16 %v1928
    %v2057 = vunpack.c.l.b16 %v1929
    %v2058 = vunpack.c.l.b16 %v1930
    %v2059 = vunpack.c.l.b16 %v1931
    %v2060 = vunpack.c.l.b16 %v1932
    %v2061 = vunpack.c.l.b16 %v1933
    %v2062 = vunpack.c.l.b16 %v1934
    %v2063 = vunpack.c.l.b16 %v1935
    %v2064 = vunpack.c.l.b16 %v1936
    %v2065 = vunpack.c.l.b16 %v1937
    %v2066 = vunpack.c.l.b16 %v1938
    %v2067 = vunpack.c.l.b16 %v1939
    %v2068 = vunpack.c.l.b16 %v1940
    %v2069 = vunpack.c.l.b16 %v1941
    %v2070 = vunpack.c.l.b16 %v1942
    %v2071 = vunpack.c.l.b16 %v1943
    %v2072 = vunpack.c.l.b16 %v1944
    %v2073 = vunpack.c.l.b16 %v1945
    %v2074 = vunpack.c.l.b16 %v1946
    %v2075 = vunpack.c.l.b16 %v1947
    %v2076 = vunpack.c.l.b16 %v1948
    %v2077 = vunpack.c.l.b16 %v1949
    %v2078 = vunpack.c.l.b16 %v1950
    %v2079 = vunpack.c.l.b16 %v1951
    %v2080 = vunpack.c.l.b16 %v1952
    %v2081 = vunpack.c.l.b16 %v1953
    %v2082 = vunpack.c.l.b16 %v1954
    %v2083 = vunpack.c.l.b16 %v1955
    %v2084 = vunpack.c.l.b16 %v1956
    %v2085 = vunpack.c.l.b16 %v1957
    %v2086 = vunpack.c.l.b16 %v1958
    %v2087 = vunpack.c.l.b16 %v1959
    %v2088 = vunpack.c.l.b16 %v1960
    %v2089 = vunpack.c.l.b16 %v1961
    %v2090 = vunpack.c.l.b16 %v1962
    %v2091 = vunpack.c.l.b16 %v1963
    %v2092 = vunpack.c.l.b16 %v1964
    %v2093 = vunpack.c.l.b16 %v1965
    %v2094 = vunpack.c.l.b16 %v1966
    %v2095 = vunpack.c.l.b16 %v1967
    %v2096 = vunpack.c.l.b16 %v1968
    %v2097 = vunpack.c.l.b16 %v1969
    %v2098 = vunpack.c.l.b16 %v1970
    %v2099 = vunpack.c.l.b16 %v1971
    %v2100 = vunpack.c.l.b16 %v1972
    %v2101 = vunpack.c.l.b16 %v1973
    %v2102 = vunpack.c.l.b16 %v1974
    %v2103 = vpack.c.b16 %v2040, %v2039
    %v2104 = vpack.c.b16 %v2042, %v2041
    %v2105 = vpack.c.b16 %v2044, %v2043
    %v2106 = vpack.c.b16 %v2046, %v2045
    %v2107 = vpack.c.b16 %v2048, %v2047
    %v2108 = vpack.c.b16 %v2050, %v2049
    %v2109 = vpack.c.b16 %v2052, %v2051
    %v2110 = vpack.c.b16 %v2054, %v2053
    %v2111 = vpack.c.b16 %v2056, %v2055
    %v2112 = vpack.c.b16 %v2058, %v2057
    %v2113 = vpack.c.b16 %v2060, %v2059
    %v2114 = vpack.c.b16 %v2062, %v2061
    %v2115 = vpack.c.b16 %v2064, %v2063
    %v2116 = vpack.c.b16 %v2066, %v2065
    %v2117 = vpack.c.b16 %v2068, %v2067
    %v2118 = vpack.c.b16 %v2070, %v2069
    %v2119 = vpack.c.b16 %v2072, %v2071
    %v2120 = vpack.c.b16 %v2074, %v2073
    %v2121 = vpack.c.b16 %v2076, %v2075
    %v2122 = vpack.c.b16 %v2078, %v2077
    %v2123 = vpack.c.b16 %v2080, %v2079
    %v2124 = vpack.c.b16 %v2082, %v2081
    %v2125 = vpack.c.b16 %v2084, %v2083
    %v2126 = vpack.c.b16 %v2086, %v2085
    %v2127 = vpack.c.b16 %v2088, %v2087
    %v2128 = vpack.c.b16 %v2090, %v2089
    %v2129 = vpack.c.b16 %v2092, %v2091
    %v2130 = vpack.c.b16 %v2094, %v2093
    %v2131 = vpack.c.b16 %v2096, %v2095
    %v2132 = vpack.c.b16 %v2098, %v2097
    %v2133 = vpack.c.b16 %v2100, %v2099
    %v2134 = vpack.c.b16 %v2102, %v2101
    %2167 = vmatpush.bf16.msra.mxu0 %v2110
    %2168 = vmatpush.bf16.msra.mxu0 %v2109
    %2169 = vmatpush.bf16.msra.mxu0 %v2108
    %2170 = vmatpush.bf16.msra.mxu0 %v2107
    %2171 = vmatpush.bf16.msra.mxu0 %v2106
    %2172 = vmatpush.bf16.msra.mxu0 %v2105
    %2173 = vmatpush.bf16.msra.mxu0 %v2104
    %2174 = vmatpush.bf16.msra.mxu0 %v2103
    %2175 = vmatmul.bf16.gmra.mxu0 %v1847
    %v2176 = vpop.f32.mrf.mxu0
    %v2177 = vadd.f32 0.0, %v2176
    %v2178 = vpop.f32.mrf.mxu0
    %v2179 = vadd.f32 0.0, %v2178
    %2180 = vmatmul.bf16.gmra.mxu0 %v1851
    %v2181 = vpop.f32.mrf.mxu0
    %v2182 = vadd.f32 0.0, %v2181
    %v2183 = vpop.f32.mrf.mxu0
    %v2184 = vadd.f32 0.0, %v2183
    %2185 = vmatmul.bf16.gmra.mxu0 %v1855
    %v2186 = vpop.f32.mrf.mxu0
    %v2187 = vadd.f32 0.0, %v2186
    %v2188 = vpop.f32.mrf.mxu0
    %v2189 = vadd.f32 0.0, %v2188
    %2190 = vmatmul.bf16.gmra.mxu0 %v1859
    %v2191 = vpop.f32.mrf.mxu0
    %v2192 = vadd.f32 0.0, %v2191
    %v2193 = vpop.f32.mrf.mxu0
    %v2194 = vadd.f32 0.0, %v2193
    %2195 = vmatmul.bf16.gmra.mxu0 %v1863
    %v2196 = vpop.f32.mrf.mxu0
    %v2197 = vadd.f32 0.0, %v2196
    %v2198 = vpop.f32.mrf.mxu0
    %v2199 = vadd.f32 0.0, %v2198
    %2200 = vmatmul.bf16.gmra.mxu0 %v1867
    %v2201 = vpop.f32.mrf.mxu0
    %v2202 = vadd.f32 0.0, %v2201
    %v2203 = vpop.f32.mrf.mxu0
    %v2204 = vadd.f32 0.0, %v2203
    %2205 = vmatmul.bf16.gmra.mxu0 %v1871
    %v2206 = vpop.f32.mrf.mxu0
    %v2207 = vadd.f32 0.0, %v2206
    %v2208 = vpop.f32.mrf.mxu0
    %v2209 = vadd.f32 0.0, %v2208
    %2210 = vmatmul.bf16.gmra.mxu0 %v1875
    %v2211 = vpop.f32.mrf.mxu0
    %v2212 = vadd.f32 0.0, %v2211
    %v2213 = vpop.f32.mrf.mxu0
    %v2214 = vadd.f32 0.0, %v2213
    %2215 = vmatmul.bf16.gmra.mxu0 %v1879
    %v2216 = vpop.f32.mrf.mxu0
    %v2217 = vadd.f32 0.0, %v2216
    %v2218 = vpop.f32.mrf.mxu0
    %v2219 = vadd.f32 0.0, %v2218
    %2220 = vmatmul.bf16.gmra.mxu0 %v1883
    %v2221 = vpop.f32.mrf.mxu0
    %v2222 = vadd.f32 0.0, %v2221
    %v2223 = vpop.f32.mrf.mxu0
    %v2224 = vadd.f32 0.0, %v2223
    %2225 = vmatmul.bf16.gmra.mxu0 %v1887
    %v2226 = vpop.f32.mrf.mxu0
    %v2227 = vadd.f32 0.0, %v2226
    %v2228 = vpop.f32.mrf.mxu0
    %v2229 = vadd.f32 0.0, %v2228
    %2230 = vmatmul.bf16.gmra.mxu0 %v1891
    %v2231 = vpop.f32.mrf.mxu0
    %v2232 = vadd.f32 0.0, %v2231
    %v2233 = vpop.f32.mrf.mxu0
    %v2234 = vadd.f32 0.0, %v2233
    %2235 = vmatmul.bf16.gmra.mxu0 %v1895
    %v2236 = vpop.f32.mrf.mxu0
    %v2237 = vadd.f32 0.0, %v2236
    %v2238 = vpop.f32.mrf.mxu0
    %v2239 = vadd.f32 0.0, %v2238
    %2240 = vmatmul.bf16.gmra.mxu0 %v1899
    %v2241 = vpop.f32.mrf.mxu0
    %v2242 = vadd.f32 0.0, %v2241
    %v2243 = vpop.f32.mrf.mxu0
    %v2244 = vadd.f32 0.0, %v2243
    %2245 = vmatmul.bf16.gmra.mxu0 %v1903
    %v2246 = vpop.f32.mrf.mxu0
    %v2247 = vadd.f32 0.0, %v2246
    %v2248 = vpop.f32.mrf.mxu0
    %v2249 = vadd.f32 0.0, %v2248
    %2250 = vmatmul.bf16.gmra.mxu0 %v1907
    %v2251 = vpop.f32.mrf.mxu0
    %v2252 = vadd.f32 0.0, %v2251
    %v2253 = vpop.f32.mrf.mxu0
    %v2254 = vadd.f32 0.0, %v2253
    %2255 = vdwg.mxu0
    %2256 = vmatpush.bf16.msra.mxu0 %v2118
    %2257 = vmatpush.bf16.msra.mxu0 %v2117
    %2258 = vmatpush.bf16.msra.mxu0 %v2116
    %2259 = vmatpush.bf16.msra.mxu0 %v2115
    %2260 = vmatpush.bf16.msra.mxu0 %v2114
    %2261 = vmatpush.bf16.msra.mxu0 %v2113
    %2262 = vmatpush.bf16.msra.mxu0 %v2112
    %2263 = vmatpush.bf16.msra.mxu0 %v2111
    %2264 = vmatmul.bf16.gmra.mxu0 %v1848
    %v2265 = vpop.f32.mrf.mxu0
    %v2266 = vadd.f32 %v2177, %v2265
    %v2267 = vpop.f32.mrf.mxu0
    %v2268 = vadd.f32 %v2179, %v2267
    %2269 = vmatmul.bf16.gmra.mxu0 %v1852
    %v2270 = vpop.f32.mrf.mxu0
    %v2271 = vadd.f32 %v2182, %v2270
    %v2272 = vpop.f32.mrf.mxu0
    %v2273 = vadd.f32 %v2184, %v2272
    %2274 = vmatmul.bf16.gmra.mxu0 %v1856
    %v2275 = vpop.f32.mrf.mxu0
    %v2276 = vadd.f32 %v2187, %v2275
    %v2277 = vpop.f32.mrf.mxu0
    %v2278 = vadd.f32 %v2189, %v2277
    %2279 = vmatmul.bf16.gmra.mxu0 %v1860
    %v2280 = vpop.f32.mrf.mxu0
    %v2281 = vadd.f32 %v2192, %v2280
    %v2282 = vpop.f32.mrf.mxu0
    %v2283 = vadd.f32 %v2194, %v2282
    %2284 = vmatmul.bf16.gmra.mxu0 %v1864
    %v2285 = vpop.f32.mrf.mxu0
    %v2286 = vadd.f32 %v2197, %v2285
    %v2287 = vpop.f32.mrf.mxu0
    %v2288 = vadd.f32 %v2199, %v2287
    %2289 = vmatmul.bf16.gmra.mxu0 %v1868
    %v2290 = vpop.f32.mrf.mxu0
    %v2291 = vadd.f32 %v2202, %v2290
    %v2292 = vpop.f32.mrf.mxu0
    %v2293 = vadd.f32 %v2204, %v2292
    %2294 = vmatmul.bf16.gmra.mxu0 %v1872
    %v2295 = vpop.f32.mrf.mxu0
    %v2296 = vadd.f32 %v2207, %v2295
    %v2297 = vpop.f32.mrf.mxu0
    %v2298 = vadd.f32 %v2209, %v2297
    %2299 = vmatmul.bf16.gmra.mxu0 %v1876
    %v2300 = vpop.f32.mrf.mxu0
    %v2301 = vadd.f32 %v2212, %v2300
    %v2302 = vpop.f32.mrf.mxu0
    %v2303 = vadd.f32 %v2214, %v2302
    %2304 = vmatmul.bf16.gmra.mxu0 %v1880
    %v2305 = vpop.f32.mrf.mxu0
    %v2306 = vadd.f32 %v2217, %v2305
    %v2307 = vpop.f32.mrf.mxu0
    %v2308 = vadd.f32 %v2219, %v2307
    %2309 = vmatmul.bf16.gmra.mxu0 %v1884
    %v2310 = vpop.f32.mrf.mxu0
    %v2311 = vadd.f32 %v2222, %v2310
    %v2312 = vpop.f32.mrf.mxu0
    %v2313 = vadd.f32 %v2224, %v2312
    %2314 = vmatmul.bf16.gmra.mxu0 %v1888
    %v2315 = vpop.f32.mrf.mxu0
    %v2316 = vadd.f32 %v2227, %v2315
    %v2317 = vpop.f32.mrf.mxu0
    %v2318 = vadd.f32 %v2229, %v2317
    %2319 = vmatmul.bf16.gmra.mxu0 %v1892
    %v2320 = vpop.f32.mrf.mxu0
    %v2321 = vadd.f32 %v2232, %v2320
    %v2322 = vpop.f32.mrf.mxu0
    %v2323 = vadd.f32 %v2234, %v2322
    %2324 = vmatmul.bf16.gmra.mxu0 %v1896
    %v2325 = vpop.f32.mrf.mxu0
    %v2326 = vadd.f32 %v2237, %v2325
    %v2327 = vpop.f32.mrf.mxu0
    %v2328 = vadd.f32 %v2239, %v2327
    %2329 = vmatmul.bf16.gmra.mxu0 %v1900
    %v2330 = vpop.f32.mrf.mxu0
    %v2331 = vadd.f32 %v2242, %v2330
    %v2332 = vpop.f32.mrf.mxu0
    %v2333 = vadd.f32 %v2244, %v2332
    %2334 = vmatmul.bf16.gmra.mxu0 %v1904
    %v2335 = vpop.f32.mrf.mxu0
    %v2336 = vadd.f32 %v2247, %v2335
    %v2337 = vpop.f32.mrf.mxu0
    %v2338 = vadd.f32 %v2249, %v2337
    %2339 = vmatmul.bf16.gmra.mxu0 %v1908
    %v2340 = vpop.f32.mrf.mxu0
    %v2341 = vadd.f32 %v2252, %v2340
    %v2342 = vpop.f32.mrf.mxu0
    %v2343 = vadd.f32 %v2254, %v2342
    %2344 = vdwg.mxu0
    %2345 = vmatpush.bf16.msra.mxu0 %v2126
    %2346 = vmatpush.bf16.msra.mxu0 %v2125
    %2347 = vmatpush.bf16.msra.mxu0 %v2124
    %2348 = vmatpush.bf16.msra.mxu0 %v2123
    %2349 = vmatpush.bf16.msra.mxu0 %v2122
    %2350 = vmatpush.bf16.msra.mxu0 %v2121
    %2351 = vmatpush.bf16.msra.mxu0 %v2120
    %2352 = vmatpush.bf16.msra.mxu0 %v2119
    %2353 = vmatmul.bf16.gmra.mxu0 %v1849
    %v2354 = vpop.f32.mrf.mxu0
    %v2355 = vadd.f32 %v2266, %v2354
    %v2356 = vpop.f32.mrf.mxu0
    %v2357 = vadd.f32 %v2268, %v2356
    %2358 = vmatmul.bf16.gmra.mxu0 %v1853
    %v2359 = vpop.f32.mrf.mxu0
    %v2360 = vadd.f32 %v2271, %v2359
    %v2361 = vpop.f32.mrf.mxu0
    %v2362 = vadd.f32 %v2273, %v2361
    %2363 = vmatmul.bf16.gmra.mxu0 %v1857
    %v2364 = vpop.f32.mrf.mxu0
    %v2365 = vadd.f32 %v2276, %v2364
    %v2366 = vpop.f32.mrf.mxu0
    %v2367 = vadd.f32 %v2278, %v2366
    %2368 = vmatmul.bf16.gmra.mxu0 %v1861
    %v2369 = vpop.f32.mrf.mxu0
    %v2370 = vadd.f32 %v2281, %v2369
    %v2371 = vpop.f32.mrf.mxu0
    %v2372 = vadd.f32 %v2283, %v2371
    %2373 = vmatmul.bf16.gmra.mxu0 %v1865
    %v2374 = vpop.f32.mrf.mxu0
    %v2375 = vadd.f32 %v2286, %v2374
    %v2376 = vpop.f32.mrf.mxu0
    %v2377 = vadd.f32 %v2288, %v2376
    %2378 = vmatmul.bf16.gmra.mxu0 %v1869
    %v2379 = vpop.f32.mrf.mxu0
    %v2380 = vadd.f32 %v2291, %v2379
    %v2381 = vpop.f32.mrf.mxu0
    %v2382 = vadd.f32 %v2293, %v2381
    %2383 = vmatmul.bf16.gmra.mxu0 %v1873
    %v2384 = vpop.f32.mrf.mxu0
    %v2385 = vadd.f32 %v2296, %v2384
    %v2386 = vpop.f32.mrf.mxu0
    %v2387 = vadd.f32 %v2298, %v2386
    %2388 = vmatmul.bf16.gmra.mxu0 %v1877
    %v2389 = vpop.f32.mrf.mxu0
    %v2390 = vadd.f32 %v2301, %v2389
    %v2391 = vpop.f32.mrf.mxu0
    %v2392 = vadd.f32 %v2303, %v2391
    %2393 = vmatmul.bf16.gmra.mxu0 %v1881
    %v2394 = vpop.f32.mrf.mxu0
    %v2395 = vadd.f32 %v2306, %v2394
    %v2396 = vpop.f32.mrf.mxu0
    %v2397 = vadd.f32 %v2308, %v2396
    %2398 = vmatmul.bf16.gmra.mxu0 %v1885
    %v2399 = vpop.f32.mrf.mxu0
    %v2400 = vadd.f32 %v2311, %v2399
    %v2401 = vpop.f32.mrf.mxu0
    %v2402 = vadd.f32 %v2313, %v2401
    %2403 = vmatmul.bf16.gmra.mxu0 %v1889
    %v2404 = vpop.f32.mrf.mxu0
    %v2405 = vadd.f32 %v2316, %v2404
    %v2406 = vpop.f32.mrf.mxu0
    %v2407 = vadd.f32 %v2318, %v2406
    %2408 = vmatmul.bf16.gmra.mxu0 %v1893
    %v2409 = vpop.f32.mrf.mxu0
    %v2410 = vadd.f32 %v2321, %v2409
    %v2411 = vpop.f32.mrf.mxu0
    %v2412 = vadd.f32 %v2323, %v2411
    %2413 = vmatmul.bf16.gmra.mxu0 %v1897
    %v2414 = vpop.f32.mrf.mxu0
    %v2415 = vadd.f32 %v2326, %v2414
    %v2416 = vpop.f32.mrf.mxu0
    %v2417 = vadd.f32 %v2328, %v2416
    %2418 = vmatmul.bf16.gmra.mxu0 %v1901
    %v2419 = vpop.f32.mrf.mxu0
    %v2420 = vadd.f32 %v2331, %v2419
    %v2421 = vpop.f32.mrf.mxu0
    %v2422 = vadd.f32 %v2333, %v2421
    %2423 = vmatmul.bf16.gmra.mxu0 %v1905
    %v2424 = vpop.f32.mrf.mxu0
    %v2425 = vadd.f32 %v2336, %v2424
    %v2426 = vpop.f32.mrf.mxu0
    %v2427 = vadd.f32 %v2338, %v2426
    %2428 = vmatmul.bf16.gmra.mxu0 %v1909
    %v2429 = vpop.f32.mrf.mxu0
    %v2430 = vadd.f32 %v2341, %v2429
    %v2431 = vpop.f32.mrf.mxu0
    %v2432 = vadd.f32 %v2343, %v2431
    %2433 = vdwg.mxu0
    %2434 = vmatpush.bf16.msra.mxu0 %v2134
    %2435 = vmatpush.bf16.msra.mxu0 %v2133
    %2436 = vmatpush.bf16.msra.mxu0 %v2132
    %2437 = vmatpush.bf16.msra.mxu0 %v2131
    %2438 = vmatpush.bf16.msra.mxu0 %v2130
    %2439 = vmatpush.bf16.msra.mxu0 %v2129
    %2440 = vmatpush.bf16.msra.mxu0 %v2128
    %2441 = vmatpush.bf16.msra.mxu0 %v2127
    %2442 = vmatmul.bf16.gmra.mxu0 %v1850
    %v2443 = vpop.f32.mrf.mxu0
    %v2444 = vadd.f32 %v2355, %v2443
    %v2445 = vpop.f32.mrf.mxu0
    %v2446 = vadd.f32 %v2357, %v2445
    %2447 = vmatmul.bf16.gmra.mxu0 %v1854
    %v2448 = vpop.f32.mrf.mxu0
    %v2449 = vadd.f32 %v2360, %v2448
    %v2450 = vpop.f32.mrf.mxu0
    %v2451 = vadd.f32 %v2362, %v2450
    %2452 = vmatmul.bf16.gmra.mxu0 %v1858
    %v2453 = vpop.f32.mrf.mxu0
    %v2454 = vadd.f32 %v2365, %v2453
    %v2455 = vpop.f32.mrf.mxu0
    %v2456 = vadd.f32 %v2367, %v2455
    %2457 = vmatmul.bf16.gmra.mxu0 %v1862
    %v2458 = vpop.f32.mrf.mxu0
    %v2459 = vadd.f32 %v2370, %v2458
    %v2460 = vpop.f32.mrf.mxu0
    %v2461 = vadd.f32 %v2372, %v2460
    %2462 = vmatmul.bf16.gmra.mxu0 %v1866
    %v2463 = vpop.f32.mrf.mxu0
    %v2464 = vadd.f32 %v2375, %v2463
    %v2465 = vpop.f32.mrf.mxu0
    %v2466 = vadd.f32 %v2377, %v2465
    %2467 = vmatmul.bf16.gmra.mxu0 %v1870
    %v2468 = vpop.f32.mrf.mxu0
    %v2469 = vadd.f32 %v2380, %v2468
    %v2470 = vpop.f32.mrf.mxu0
    %v2471 = vadd.f32 %v2382, %v2470
    %2472 = vmatmul.bf16.gmra.mxu0 %v1874
    %v2473 = vpop.f32.mrf.mxu0
    %v2474 = vadd.f32 %v2385, %v2473
    %v2475 = vpop.f32.mrf.mxu0
    %v2476 = vadd.f32 %v2387, %v2475
    %2477 = vmatmul.bf16.gmra.mxu0 %v1878
    %v2478 = vpop.f32.mrf.mxu0
    %v2479 = vadd.f32 %v2390, %v2478
    %v2480 = vpop.f32.mrf.mxu0
    %v2481 = vadd.f32 %v2392, %v2480
    %2482 = vmatmul.bf16.gmra.mxu0 %v1882
    %v2483 = vpop.f32.mrf.mxu0
    %v2484 = vadd.f32 %v2395, %v2483
    %v2485 = vpop.f32.mrf.mxu0
    %v2486 = vadd.f32 %v2397, %v2485
    %2487 = vmatmul.bf16.gmra.mxu0 %v1886
    %v2488 = vpop.f32.mrf.mxu0
    %v2489 = vadd.f32 %v2400, %v2488
    %v2490 = vpop.f32.mrf.mxu0
    %v2491 = vadd.f32 %v2402, %v2490
    %2492 = vmatmul.bf16.gmra.mxu0 %v1890
    %v2493 = vpop.f32.mrf.mxu0
    %v2494 = vadd.f32 %v2405, %v2493
    %v2495 = vpop.f32.mrf.mxu0
    %v2496 = vadd.f32 %v2407, %v2495
    %2497 = vmatmul.bf16.gmra.mxu0 %v1894
    %v2498 = vpop.f32.mrf.mxu0
    %v2499 = vadd.f32 %v2410, %v2498
    %v2500 = vpop.f32.mrf.mxu0
    %v2501 = vadd.f32 %v2412, %v2500
    %2502 = vmatmul.bf16.gmra.mxu0 %v1898
    %v2503 = vpop.f32.mrf.mxu0
    %v2504 = vadd.f32 %v2415, %v2503
    %v2505 = vpop.f32.mrf.mxu0
    %v2506 = vadd.f32 %v2417, %v2505
    %2507 = vmatmul.bf16.gmra.mxu0 %v1902
    %v2508 = vpop.f32.mrf.mxu0
    %v2509 = vadd.f32 %v2420, %v2508
    %v2510 = vpop.f32.mrf.mxu0
    %v2511 = vadd.f32 %v2422, %v2510
    %2512 = vmatmul.bf16.gmra.mxu0 %v1906
    %v2513 = vpop.f32.mrf.mxu0
    %v2514 = vadd.f32 %v2425, %v2513
    %v2515 = vpop.f32.mrf.mxu0
    %v2516 = vadd.f32 %v2427, %v2515
    %2517 = vmatmul.bf16.gmra.mxu0 %v1910
    %v2518 = vpop.f32.mrf.mxu0
    %v2519 = vadd.f32 %v2430, %v2518
    %v2520 = vpop.f32.mrf.mxu0
    %v2521 = vadd.f32 %v2432, %v2520
    %2522 = vdwg.mxu0
    %v2523 = vadd.f32 %v1815, %v2444
    %v2524 = vadd.f32 %v1816, %v2446
    %v2525 = vadd.f32 %v1817, %v2449
    %v2526 = vadd.f32 %v1818, %v2451
    %v2527 = vadd.f32 %v1819, %v2454
    %v2528 = vadd.f32 %v1820, %v2456
    %v2529 = vadd.f32 %v1821, %v2459
    %v2530 = vadd.f32 %v1822, %v2461
    %v2531 = vadd.f32 %v1823, %v2464
    %v2532 = vadd.f32 %v1824, %v2466
    %v2533 = vadd.f32 %v1825, %v2469
    %v2534 = vadd.f32 %v1826, %v2471
    %v2535 = vadd.f32 %v1827, %v2474
    %v2536 = vadd.f32 %v1828, %v2476
    %v2537 = vadd.f32 %v1829, %v2479
    %v2538 = vadd.f32 %v1830, %v2481
    %v2539 = vadd.f32 %v1831, %v2484
    %v2540 = vadd.f32 %v1832, %v2486
    %v2541 = vadd.f32 %v1833, %v2489
    %v2542 = vadd.f32 %v1834, %v2491
    %v2543 = vadd.f32 %v1835, %v2494
    %v2544 = vadd.f32 %v1836, %v2496
    %v2545 = vadd.f32 %v1837, %v2499
    %v2546 = vadd.f32 %v1838, %v2501
    %v2547 = vadd.f32 %v1839, %v2504
    %v2548 = vadd.f32 %v1840, %v2506
    %v2549 = vadd.f32 %v1841, %v2509
    %v2550 = vadd.f32 %v1842, %v2511
    %v2551 = vadd.f32 %v1843, %v2514
    %v2552 = vadd.f32 %v1844, %v2516
    %v2553 = vadd.f32 %v1845, %v2519
    %v2554 = vadd.f32 %v1846, %v2521
    %2555 = vst [vmem:[#allocation2] sm:$0xff] %v2523
    %2556 = vst [vmem:[#allocation2 + $0x8] sm:$0xff] %v2524
    %2557 = vst [vmem:[#allocation2 + $0x10] sm:$0xff] %v2525
    %2558 = vst [vmem:[#allocation2 + $0x18] sm:$0xff] %v2526
    %2559 = vst [vmem:[#allocation2 + $0x20] sm:$0xff] %v2527
    %2560 = vst [vmem:[#allocation2 + $0x28] sm:$0xff] %v2528
    %2561 = vst [vmem:[#allocation2 + $0x30] sm:$0xff] %v2529
    %2562 = vst [vmem:[#allocation2 + $0x38] sm:$0xff] %v2530
    %2563 = vst [vmem:[#allocation2 + $0x40] sm:$0xff] %v2531
    %2564 = vst [vmem:[#allocation2 + $0x48] sm:$0xff] %v2532
    %2565 = vst [vmem:[#allocation2 + $0x50] sm:$0xff] %v2533
    %2566 = vst [vmem:[#allocation2 + $0x58] sm:$0xff] %v2534
    %2567 = vst [vmem:[#allocation2 + $0x60] sm:$0xff] %v2535
    %2568 = vst [vmem:[#allocation2 + $0x68] sm:$0xff] %v2536
    %2569 = vst [vmem:[#allocation2 + $0x70] sm:$0xff] %v2537
    %2570 = vst [vmem:[#allocation2 + $0x78] sm:$0xff] %v2538
    %2571 = vst [vmem:[#allocation2 + $0x80] sm:$0xff] %v2539
    %2572 = vst [vmem:[#allocation2 + $0x88] sm:$0xff] %v2540
    %2573 = vst [vmem:[#allocation2 + $0x90] sm:$0xff] %v2541
    %2574 = vst [vmem:[#allocation2 + $0x98] sm:$0xff] %v2542
    %2575 = vst [vmem:[#allocation2 + $0xa0] sm:$0xff] %v2543
    %2576 = vst [vmem:[#allocation2 + $0xa8] sm:$0xff] %v2544
    %2577 = vst [vmem:[#allocation2 + $0xb0] sm:$0xff] %v2545
    %2578 = vst [vmem:[#allocation2 + $0xb8] sm:$0xff] %v2546
    %2579 = vst [vmem:[#allocation2 + $0xc0] sm:$0xff] %v2547
    %2580 = vst [vmem:[#allocation2 + $0xc8] sm:$0xff] %v2548
    %2581 = vst [vmem:[#allocation2 + $0xd0] sm:$0xff] %v2549
    %2582 = vst [vmem:[#allocation2 + $0xd8] sm:$0xff] %v2550
    %2583 = vst [vmem:[#allocation2 + $0xe0] sm:$0xff] %v2551
    %2584 = vst [vmem:[#allocation2 + $0xe8] sm:$0xff] %v2552
    %2585 = vst [vmem:[#allocation2 + $0xf0] sm:$0xff] %v2553
    %2586 = vst [vmem:[#allocation2 + $0xf8] sm:$0xff] %v2554
    // Predicated region
    $region26: #{mlp_forward.1} parent=1 // pred_check
      %p2587 = pneg %p21
    $region27: #{mlp_forward.1} parent=1 // pred_check_branch
      %2589 = sbr.rel (%p2587) target = $region29
    $region28: #{mlp_forward.1} parent=1 // pred_region
      %v2590 = vld [vmem:[#allocation2] sm:$0xff]
      %v2591 = vld [vmem:[#allocation2 + $0x8] sm:$0xff]
      %v2592 = vld [vmem:[#allocation2 + $0x10] sm:$0xff]
      %v2593 = vld [vmem:[#allocation2 + $0x18] sm:$0xff]
      %v2594 = vld [vmem:[#allocation2 + $0x20] sm:$0xff]
      %v2595 = vld [vmem:[#allocation2 + $0x28] sm:$0xff]
      %v2596 = vld [vmem:[#allocation2 + $0x30] sm:$0xff]
      %v2597 = vld [vmem:[#allocation2 + $0x38] sm:$0xff]
      %v2598 = vld [vmem:[#allocation2 + $0x40] sm:$0xff]
      %v2599 = vld [vmem:[#allocation2 + $0x48] sm:$0xff]
      %v2600 = vld [vmem:[#allocation2 + $0x50] sm:$0xff]
      %v2601 = vld [vmem:[#allocation2 + $0x58] sm:$0xff]
      %v2602 = vld [vmem:[#allocation2 + $0x60] sm:$0xff]
      %v2603 = vld [vmem:[#allocation2 + $0x68] sm:$0xff]
      %v2604 = vld [vmem:[#allocation2 + $0x70] sm:$0xff]
      %v2605 = vld [vmem:[#allocation2 + $0x78] sm:$0xff]
      %v2606 = vld [vmem:[#allocation2 + $0x80] sm:$0xff]
      %v2607 = vld [vmem:[#allocation2 + $0x88] sm:$0xff]
      %v2608 = vld [vmem:[#allocation2 + $0x90] sm:$0xff]
      %v2609 = vld [vmem:[#allocation2 + $0x98] sm:$0xff]
      %v2610 = vld [vmem:[#allocation2 + $0xa0] sm:$0xff]
      %v2611 = vld [vmem:[#allocation2 + $0xa8] sm:$0xff]
      %v2612 = vld [vmem:[#allocation2 + $0xb0] sm:$0xff]
      %v2613 = vld [vmem:[#allocation2 + $0xb8] sm:$0xff]
      %v2614 = vld [vmem:[#allocation2 + $0xc0] sm:$0xff]
      %v2615 = vld [vmem:[#allocation2 + $0xc8] sm:$0xff]
      %v2616 = vld [vmem:[#allocation2 + $0xd0] sm:$0xff]
      %v2617 = vld [vmem:[#allocation2 + $0xd8] sm:$0xff]
      %v2618 = vld [vmem:[#allocation2 + $0xe0] sm:$0xff]
      %v2619 = vld [vmem:[#allocation2 + $0xe8] sm:$0xff]
      %v2620 = vld [vmem:[#allocation2 + $0xf0] sm:$0xff]
      %v2621 = vld [vmem:[#allocation2 + $0xf8] sm:$0xff]
      %v2622 = vld [vmem:[%s4] sm:$0x1]
      %v2624 = vperm.slane %v2622, 0
      %v2626 = vadd.f32 %v2590, %v2624
      %v2627 = vadd.f32 %v2591, %v2624
      %v2628 = vadd.f32 %v2592, %v2624
      %v2629 = vadd.f32 %v2593, %v2624
      %v2630 = vadd.f32 %v2594, %v2624
      %v2631 = vadd.f32 %v2595, %v2624
      %v2632 = vadd.f32 %v2596, %v2624
      %v2633 = vadd.f32 %v2597, %v2624
      %v2634 = vadd.f32 %v2598, %v2624
      %v2635 = vadd.f32 %v2599, %v2624
      %v2636 = vadd.f32 %v2600, %v2624
      %v2637 = vadd.f32 %v2601, %v2624
      %v2638 = vadd.f32 %v2602, %v2624
      %v2639 = vadd.f32 %v2603, %v2624
      %v2640 = vadd.f32 %v2604, %v2624
      %v2641 = vadd.f32 %v2605, %v2624
      %v2642 = vadd.f32 %v2606, %v2624
      %v2643 = vadd.f32 %v2607, %v2624
      %v2644 = vadd.f32 %v2608, %v2624
      %v2645 = vadd.f32 %v2609, %v2624
      %v2646 = vadd.f32 %v2610, %v2624
      %v2647 = vadd.f32 %v2611, %v2624
      %v2648 = vadd.f32 %v2612, %v2624
      %v2649 = vadd.f32 %v2613, %v2624
      %v2650 = vadd.f32 %v2614, %v2624
      %v2651 = vadd.f32 %v2615, %v2624
      %v2652 = vadd.f32 %v2616, %v2624
      %v2653 = vadd.f32 %v2617, %v2624
      %v2654 = vadd.f32 %v2618, %v2624
      %v2655 = vadd.f32 %v2619, %v2624
      %v2656 = vadd.f32 %v2620, %v2624
      %v2657 = vadd.f32 %v2621, %v2624
      %2658 = vst [vmem:[#allocation2] sm:$0xff] %v2626
      %2659 = vst [vmem:[#allocation2 + $0x8] sm:$0xff] %v2627
      %2660 = vst [vmem:[#allocation2 + $0x10] sm:$0xff] %v2628
      %2661 = vst [vmem:[#allocation2 + $0x18] sm:$0xff] %v2629
      %2662 = vst [vmem:[#allocation2 + $0x20] sm:$0xff] %v2630
      %2663 = vst [vmem:[#allocation2 + $0x28] sm:$0xff] %v2631
      %2664 = vst [vmem:[#allocation2 + $0x30] sm:$0xff] %v2632
      %2665 = vst [vmem:[#allocation2 + $0x38] sm:$0xff] %v2633
      %2666 = vst [vmem:[#allocation2 + $0x40] sm:$0xff] %v2634
      %2667 = vst [vmem:[#allocation2 + $0x48] sm:$0xff] %v2635
      %2668 = vst [vmem:[#allocation2 + $0x50] sm:$0xff] %v2636
      %2669 = vst [vmem:[#allocation2 + $0x58] sm:$0xff] %v2637
      %2670 = vst [vmem:[#allocation2 + $0x60] sm:$0xff] %v2638
      %2671 = vst [vmem:[#allocation2 + $0x68] sm:$0xff] %v2639
      %2672 = vst [vmem:[#allocation2 + $0x70] sm:$0xff] %v2640
      %2673 = vst [vmem:[#allocation2 + $0x78] sm:$0xff] %v2641
      %2674 = vst [vmem:[#allocation2 + $0x80] sm:$0xff] %v2642
      %2675 = vst [vmem:[#allocation2 + $0x88] sm:$0xff] %v2643
      %2676 = vst [vmem:[#allocation2 + $0x90] sm:$0xff] %v2644
      %2677 = vst [vmem:[#allocation2 + $0x98] sm:$0xff] %v2645
      %2678 = vst [vmem:[#allocation2 + $0xa0] sm:$0xff] %v2646
      %2679 = vst [vmem:[#allocation2 + $0xa8] sm:$0xff] %v2647
      %2680 = vst [vmem:[#allocation2 + $0xb0] sm:$0xff] %v2648
      %2681 = vst [vmem:[#allocation2 + $0xb8] sm:$0xff] %v2649
      %2682 = vst [vmem:[#allocation2 + $0xc0] sm:$0xff] %v2650
      %2683 = vst [vmem:[#allocation2 + $0xc8] sm:$0xff] %v2651
      %2684 = vst [vmem:[#allocation2 + $0xd0] sm:$0xff] %v2652
      %2685 = vst [vmem:[#allocation2 + $0xd8] sm:$0xff] %v2653
      %2686 = vst [vmem:[#allocation2 + $0xe0] sm:$0xff] %v2654
      %2687 = vst [vmem:[#allocation2 + $0xe8] sm:$0xff] %v2655
      %2688 = vst [vmem:[#allocation2 + $0xf0] sm:$0xff] %v2656
      %2689 = vst [vmem:[#allocation2 + $0xf8] sm:$0xff] %v2657
    $region29: #{mlp_forward.1} parent=1 // pred_fallthru
      _
    // Predicated region
    $region30: #{mlp_forward.1} parent=1 // pred_check
      _
    $region31: #{mlp_forward.1} parent=1 // pred_check_branch
      %2691 = sbr.rel (0) target = $region33
    $region32: #{mlp_forward.1} parent=1 // pred_region
      %2693 = vsyncadd [#allocation3], 0
      %s2694 = sshll.u32 [#allocation2], 4
      %s2695 = int_to_ptr.vmem [resolvable:$true] %s2694
      %s2696 = sshll.u32 %s5, 4
      %s2697 = int_to_ptr.hbm [resolvable:$true] %s2696
      %2702 = dma.vmem_to_hbm [thread:$0]  %s2695, 4096, %s2697, [#allocation3], 128, 128, 8
    $region33: #{mlp_forward.1} parent=1 // pred_fallthru
      _
    // Predicated region
    $region34: #{mlp_forward.1} parent=1 // pred_check
      _
    $region35: #{mlp_forward.1} parent=1 // pred_check_branch
      %2704 = sbr.rel (0) target = $region37
    $region36: #{mlp_forward.1} parent=1 // pred_region
      %2706 = dma.done [#allocation3], 4096
    $region37: #{mlp_forward.1} parent=1 // pred_fallthru
      _
    %2707 = vsyncpa [#allocation3], 1

</llo_original>
